<compile_context>
chip_gen: v6e
topology: v6e:2x2x1
jax: 0.10.0
libtpu: 0.0.40
codegen_flags: <defaults>
</compile_context>

<pallas_src>
import functools

import jax
import jax.numpy as jnp
from jax import lax
from jax.experimental import pallas as pl
from jax.experimental.pallas import tpu as pltpu


def _rnn_classifier_kernel(x_ref, wih_ref, whh_ref, b_ref,
                           w1_ref, b1_ref, w2_ref, b2_ref,
                           out_ref, h_scratch):
    """One grid step = one block of `TB` timesteps of the tanh RNN.

    x_ref:   (B, TB, D)  current time block of the batch-first input
    wih_ref: (D, H)      input->hidden weight   (transposed vs PyTorch)
    whh_ref: (H, H)      hidden->hidden weight  (transposed vs PyTorch)
    b_ref:   (1, H)      b_ih + b_hh
    w1_ref:  (H, H), b1_ref: (1, H)   classifier layer 1
    w2_ref:  (H, C), b2_ref: (1, C)   classifier layer 2
    out_ref: (B, C)      logits (written on the last grid step only)
    h_scratch: (B, H) f32 hidden state carried across grid steps
    """
    t_blk = pl.program_id(0)
    n_blk = pl.num_programs(0)
    B, TB, D = x_ref.shape
    H = h_scratch.shape[1]

    @pl.when(t_blk == 0)
    def _init():
        h_scratch[...] = jnp.zeros_like(h_scratch)

    # Hoist weight / bias loads out of the recurrent loop: read once per block.
    wih = wih_ref[...]            # (D, H)
    whh = whh_ref[...]            # (H, H)
    b = b_ref[...]                # (1, H)

    # Input projection for the whole time block in a single MXU matmul:
    #   U = reshape(x, (B*TB, D)) @ Wih + (b_ih + b_hh)
    xb = x_ref[...]                                            # (B, TB, D)
    u = (jnp.dot(xb.reshape(B * TB, D), wih,
                 preferred_element_type=jnp.float32) + b)      # (B*TB, H)
    u = u.reshape(B, TB, H)

    # Serial recurrence: only h @ Whh + tanh remain on the critical path.
    # TB is static, so this Python loop is the fully-unrolled recurrence with
    # static slices into `u` (equivalent to lax.fori_loop(..., unroll=True)).
    h = h_scratch[...]                                         # (B, H)
    for i in range(TB):
        h = jnp.tanh(u[:, i, :]
                     + jnp.dot(h, whh, preferred_element_type=jnp.float32))
    h_scratch[...] = h

    # Classifier on the final hidden state, only on the last time block.
    @pl.when(t_blk == n_blk - 1)
    def _finalize():
        z = jnp.dot(h, w1_ref[...], preferred_element_type=jnp.float32) + b1_ref[...]
        logits = (jnp.dot(z, w2_ref[...], preferred_element_type=jnp.float32)
                  + b2_ref[...])
        out_ref[...] = logits.astype(out_ref.dtype)


def _replicated_spec(shape):
    """Full-array block that stays resident in VMEM across all grid steps."""
    return pl.BlockSpec(shape, lambda t: (0,) * len(shape))


@functools.partial(jax.jit, static_argnames=("time_block",))
def vanilla_rnn_classifier(x, params, *, time_block=8):
    """x: (B, T, D) float32, batch_first like the PyTorch module."""
    B, T, D = x.shape
    wih_t, whh_t, b, w1_t, b1, w2_t, b2 = params
    H = whh_t.shape[0]
    C = w2_t.shape[1]

    # Timesteps streamed per grid step.  Keep the BlockSpec tiling legal:
    # second-to-last block dim must be a multiple of 8 or equal to T.
    tb = time_block
    if T % tb != 0 or (tb != T and tb % 8 != 0):
        tb = T                      # fall back to a single full time block
    grid = (T // tb,)

    # NOTE(v6e/v7x): casting x / weights to bf16 (keeping f32 accumulation and
    # the f32 h scratch) halves DMA bytes and ~doubles MXU rate; kept f32 here
    # so the kernel matches the f32 reference tightly.
    # NOTE(v7x): for large B, add a leading "parallel" grid axis over batch
    # (the recurrence is independent per batch row) so both TensorCores work.
    out = pl.pallas_call(
        _rnn_classifier_kernel,
        out_shape=jax.ShapeDtypeStruct((B, C), jnp.float32),
        grid=grid,
        in_specs=[
            pl.BlockSpec((B, tb, D), lambda t: (0, t, 0)),   # stream x over T
            _replicated_spec(wih_t.shape),
            _replicated_spec(whh_t.shape),
            _replicated_spec(b.shape),
            _replicated_spec(w1_t.shape),
            _replicated_spec(b1.shape),
            _replicated_spec(w2_t.shape),
            _replicated_spec(b2.shape),
        ],
        out_specs=pl.BlockSpec((B, C), lambda t: (0, 0)),
        scratch_shapes=[pltpu.VMEM((B, H), jnp.float32)],
        compiler_params=pltpu.CompilerParams(
            dimension_semantics=("arbitrary",),   # serial recurrence over T
        ),
    )(x, wih_t, whh_t, b, w1_t, b1, w2_t, b2)
    return out


def init_params(key, in_dim, hidden_size, n_classes):
    """Deterministic init matching PyTorch shapes (stored pre-transposed)."""
    k = jax.random.split(key, 8)
    s_rnn = 1.0 / jnp.sqrt(hidden_size)
    # nn.RNN weights: weight_ih_l0 (H, D), weight_hh_l0 (H, H), biases (H,)
    w_ih = jax.random.uniform(k[0], (hidden_size, in_dim), jnp.float32, -s_rnn, s_rnn)
    w_hh = jax.random.uniform(k[1], (hidden_size, hidden_size), jnp.float32, -s_rnn, s_rnn)
    b_ih = jax.random.uniform(k[2], (hidden_size,), jnp.float32, -s_rnn, s_rnn)
    b_hh = jax.random.uniform(k[3], (hidden_size,), jnp.float32, -s_rnn, s_rnn)
    # classifier: Linear(H, H) then Linear(H, C)
    s1 = 1.0 / jnp.sqrt(hidden_size)
    w1 = jax.random.uniform(k[4], (hidden_size, hidden_size), jnp.float32, -s1, s1)
    b1 = jax.random.uniform(k[5], (hidden_size,), jnp.float32, -s1, s1)
    w2 = jax.random.uniform(k[6], (n_classes, hidden_size), jnp.float32, -s1, s1)
    b2 = jax.random.uniform(k[7], (n_classes,), jnp.float32, -s1, s1)

    return (
        w_ih.T,                               # (D, H)
        w_hh.T,                               # (H, H)
        (b_ih + b_hh).reshape(1, hidden_size),
        w1.T,                                 # (H, H)
        b1.reshape(1, hidden_size),
        w2.T,                                 # (H, C)
        b2.reshape(1, n_classes),
    )


def reference_forward(x, params):
    """Pure-JAX reference matching PyTorch nn.RNN + classifier."""
    wih_t, whh_t, b, w1_t, b1, w2_t, b2 = params
    B = x.shape[0]
    H = whh_t.shape[0]
    hp = lax.Precision.HIGHEST
    h = jnp.zeros((B, H), jnp.float32)

    def step(h, xt):
        h_new = jnp.tanh(jnp.dot(xt, wih_t, precision=hp)
                         + jnp.dot(h, whh_t, precision=hp) + b)
        return h_new, None

    h_final, _ = lax.scan(step, h, jnp.transpose(x, (1, 0, 2)))
    z = jnp.dot(h_final, w1_t, precision=hp) + b1
    return jnp.dot(z, w2_t, precision=hp) + b2


if __name__ == "__main__":
    B, T, D = 2, 16, 16           # T=16, time_block=8 -> 2 pipelined grid steps
    hidden_size, n_classes = 32, 4

    key = jax.random.PRNGKey(0)
    kx, kp = jax.random.split(key)
    x = jax.random.normal(kx, (B, T, D), jnp.float32)
    params = init_params(kp, D, hidden_size, n_classes)

    out = vanilla_rnn_classifier(x, params, time_block=8)
    out = jax.block_until_ready(out)

    ref = reference_forward(x, params)
    assert out.shape == (B, n_classes)
    assert jnp.allclose(out, ref, atol=1e-4, rtol=1e-4), (out, ref)

    print("KERNEL_OK")
</pallas_src>

<mosaic_0001>
module attributes {stable_mosaic.version = 11 : i64} {
  func.func @_rnn_classifier_kernel(%arg0: i32, %arg1: memref<2x8x16xf32, #tpu.memory_space<vmem>>, %arg2: memref<16x32xf32, #tpu.memory_space<vmem>>, %arg3: memref<32x32xf32, #tpu.memory_space<vmem>>, %arg4: memref<1x32xf32, #tpu.memory_space<vmem>>, %arg5: memref<32x32xf32, #tpu.memory_space<vmem>>, %arg6: memref<1x32xf32, #tpu.memory_space<vmem>>, %arg7: memref<32x4xf32, #tpu.memory_space<vmem>>, %arg8: memref<1x4xf32, #tpu.memory_space<vmem>>, %arg9: memref<2x4xf32, #tpu.memory_space<vmem>>, %arg10: memref<2x32xf32, #tpu.memory_space<vmem>>) attributes {dimension_semantics = [#tpu.dimension_semantics<arbitrary>], iteration_bounds = array<i64: 2>, scalar_prefetch = 0 : i64, scratch_operands = 1 : i64, tpu.core_type = #tpu.core_type<tc>, window_params = [{transform_indices = @transform_0, window_bounds = array<i64: 2, 8, 16>}, {pipeline_mode = #tpu.pipeline_mode<synchronous>, transform_indices = @transform_1, window_bounds = array<i64: 16, 32>}, {pipeline_mode = #tpu.pipeline_mode<synchronous>, transform_indices = @transform_2, window_bounds = array<i64: 32, 32>}, {pipeline_mode = #tpu.pipeline_mode<synchronous>, transform_indices = @transform_3, window_bounds = array<i64: 1, 32>}, {pipeline_mode = #tpu.pipeline_mode<synchronous>, transform_indices = @transform_4, window_bounds = array<i64: 32, 32>}, {pipeline_mode = #tpu.pipeline_mode<synchronous>, transform_indices = @transform_5, window_bounds = array<i64: 1, 32>}, {pipeline_mode = #tpu.pipeline_mode<synchronous>, transform_indices = @transform_6, window_bounds = array<i64: 32, 4>}, {pipeline_mode = #tpu.pipeline_mode<synchronous>, transform_indices = @transform_7, window_bounds = array<i64: 1, 4>}, {pipeline_mode = #tpu.pipeline_mode<synchronous>, transform_indices = @transform_8, window_bounds = array<i64: 2, 4>}]} {
    %c0_i32 = arith.constant 0 : i32
    %0 = arith.cmpi eq, %arg0, %c0_i32 : i32
    %1 = arith.extui %0 : i1 to i32
    %c0_i32_0 = arith.constant 0 : i32
    %2 = arith.cmpi ne, %1, %c0_i32_0 : i32
    scf.if %2 {
      %cst_22 = arith.constant 0.000000e+00 : f32
      %57 = vector.broadcast %cst_22 : f32 to vector<2x32xf32>
      %c0_23 = arith.constant 0 : index
      %c0_24 = arith.constant 0 : index
      %58 = vector.load %arg10[%c0_23, %c0_24] : memref<2x32xf32, #tpu.memory_space<vmem>>, vector<2x32xf32>
      tpu.vector_store %arg10[%c0_23, %c0_24], %57 {strides = array<i32>} : memref<2x32xf32, #tpu.memory_space<vmem>>, vector<2x32xf32>,
    } else {
    }
    %c0 = arith.constant 0 : index
    %c0_1 = arith.constant 0 : index
    %3 = vector.load %arg2[%c0, %c0_1] : memref<16x32xf32, #tpu.memory_space<vmem>>, vector<16x32xf32>
    %c0_2 = arith.constant 0 : index
    %c0_3 = arith.constant 0 : index
    %4 = vector.load %arg3[%c0_2, %c0_3] : memref<32x32xf32, #tpu.memory_space<vmem>>, vector<32x32xf32>
    %c0_4 = arith.constant 0 : index
    %c0_5 = arith.constant 0 : index
    %5 = vector.load %arg4[%c0_4, %c0_5] : memref<1x32xf32, #tpu.memory_space<vmem>>, vector<1x32xf32>
    %c0_6 = arith.constant 0 : index
    %c0_7 = arith.constant 0 : index
    %c0_8 = arith.constant 0 : index
    %6 = vector.load %arg1[%c0_6, %c0_7, %c0_8] : memref<2x8x16xf32, #tpu.memory_space<vmem>>, vector<2x8x16xf32>
    %7 = vector.shape_cast %6 : vector<2x8x16xf32> to vector<16x16xf32>
    %cst = arith.constant dense<0.000000e+00> : vector<16x32xf32>
    %8 = tpu.matmul %7, %3, %cst {dimension_numbers = #tpu.dot_dimension_numbers<[1], [0], [0], [1], [0, 0, 1, 1], [], []>} : vector<16x16xf32>, vector<16x32xf32>, vector<16x32xf32> -> vector<16x32xf32>
    %9 = vector.broadcast %5 : vector<1x32xf32> to vector<16x32xf32>
    %10 = arith.addf %8, %9 : vector<16x32xf32>
    %11 = vector.shape_cast %10 : vector<16x32xf32> to vector<2x8x32xf32>
    %c0_9 = arith.constant 0 : index
    %c0_10 = arith.constant 0 : index
    %12 = vector.load %arg10[%c0_9, %c0_10] : memref<2x32xf32, #tpu.memory_space<vmem>>, vector<2x32xf32>
    %13 = vector.extract_strided_slice %11 {offsets = [0, 0, 0], sizes = [2, 1, 32], strides = [1, 1, 1]} : vector<2x8x32xf32> to vector<2x1x32xf32>
    %14 = vector.shape_cast %13 : vector<2x1x32xf32> to vector<2x32xf32>
    %cst_11 = arith.constant dense<0.000000e+00> : vector<2x32xf32>
    %15 = tpu.matmul %12, %4, %cst_11 {dimension_numbers = #tpu.dot_dimension_numbers<[1], [0], [0], [1], [0, 0, 1, 1], [], []>} : vector<2x32xf32>, vector<32x32xf32>, vector<2x32xf32> -> vector<2x32xf32>
    %16 = arith.addf %14, %15 : vector<2x32xf32>
    %17 = math.tanh %16 : vector<2x32xf32>
    %18 = vector.extract_strided_slice %11 {offsets = [0, 1, 0], sizes = [2, 1, 32], strides = [1, 1, 1]} : vector<2x8x32xf32> to vector<2x1x32xf32>
    %19 = vector.shape_cast %18 : vector<2x1x32xf32> to vector<2x32xf32>
    %cst_12 = arith.constant dense<0.000000e+00> : vector<2x32xf32>
    %20 = tpu.matmul %17, %4, %cst_12 {dimension_numbers = #tpu.dot_dimension_numbers<[1], [0], [0], [1], [0, 0, 1, 1], [], []>} : vector<2x32xf32>, vector<32x32xf32>, vector<2x32xf32> -> vector<2x32xf32>
    %21 = arith.addf %19, %20 : vector<2x32xf32>
    %22 = math.tanh %21 : vector<2x32xf32>
    %23 = vector.extract_strided_slice %11 {offsets = [0, 2, 0], sizes = [2, 1, 32], strides = [1, 1, 1]} : vector<2x8x32xf32> to vector<2x1x32xf32>
    %24 = vector.shape_cast %23 : vector<2x1x32xf32> to vector<2x32xf32>
    %cst_13 = arith.constant dense<0.000000e+00> : vector<2x32xf32>
    %25 = tpu.matmul %22, %4, %cst_13 {dimension_numbers = #tpu.dot_dimension_numbers<[1], [0], [0], [1], [0, 0, 1, 1], [], []>} : vector<2x32xf32>, vector<32x32xf32>, vector<2x32xf32> -> vector<2x32xf32>
    %26 = arith.addf %24, %25 : vector<2x32xf32>
    %27 = math.tanh %26 : vector<2x32xf32>
    %28 = vector.extract_strided_slice %11 {offsets = [0, 3, 0], sizes = [2, 1, 32], strides = [1, 1, 1]} : vector<2x8x32xf32> to vector<2x1x32xf32>
    %29 = vector.shape_cast %28 : vector<2x1x32xf32> to vector<2x32xf32>
    %cst_14 = arith.constant dense<0.000000e+00> : vector<2x32xf32>
    %30 = tpu.matmul %27, %4, %cst_14 {dimension_numbers = #tpu.dot_dimension_numbers<[1], [0], [0], [1], [0, 0, 1, 1], [], []>} : vector<2x32xf32>, vector<32x32xf32>, vector<2x32xf32> -> vector<2x32xf32>
    %31 = arith.addf %29, %30 : vector<2x32xf32>
    %32 = math.tanh %31 : vector<2x32xf32>
    %33 = vector.extract_strided_slice %11 {offsets = [0, 4, 0], sizes = [2, 1, 32], strides = [1, 1, 1]} : vector<2x8x32xf32> to vector<2x1x32xf32>
    %34 = vector.shape_cast %33 : vector<2x1x32xf32> to vector<2x32xf32>
    %cst_15 = arith.constant dense<0.000000e+00> : vector<2x32xf32>
    %35 = tpu.matmul %32, %4, %cst_15 {dimension_numbers = #tpu.dot_dimension_numbers<[1], [0], [0], [1], [0, 0, 1, 1], [], []>} : vector<2x32xf32>, vector<32x32xf32>, vector<2x32xf32> -> vector<2x32xf32>
    %36 = arith.addf %34, %35 : vector<2x32xf32>
    %37 = math.tanh %36 : vector<2x32xf32>
    %38 = vector.extract_strided_slice %11 {offsets = [0, 5, 0], sizes = [2, 1, 32], strides = [1, 1, 1]} : vector<2x8x32xf32> to vector<2x1x32xf32>
    %39 = vector.shape_cast %38 : vector<2x1x32xf32> to vector<2x32xf32>
    %cst_16 = arith.constant dense<0.000000e+00> : vector<2x32xf32>
    %40 = tpu.matmul %37, %4, %cst_16 {dimension_numbers = #tpu.dot_dimension_numbers<[1], [0], [0], [1], [0, 0, 1, 1], [], []>} : vector<2x32xf32>, vector<32x32xf32>, vector<2x32xf32> -> vector<2x32xf32>
    %41 = arith.addf %39, %40 : vector<2x32xf32>
    %42 = math.tanh %41 : vector<2x32xf32>
    %43 = vector.extract_strided_slice %11 {offsets = [0, 6, 0], sizes = [2, 1, 32], strides = [1, 1, 1]} : vector<2x8x32xf32> to vector<2x1x32xf32>
    %44 = vector.shape_cast %43 : vector<2x1x32xf32> to vector<2x32xf32>
    %cst_17 = arith.constant dense<0.000000e+00> : vector<2x32xf32>
    %45 = tpu.matmul %42, %4, %cst_17 {dimension_numbers = #tpu.dot_dimension_numbers<[1], [0], [0], [1], [0, 0, 1, 1], [], []>} : vector<2x32xf32>, vector<32x32xf32>, vector<2x32xf32> -> vector<2x32xf32>
    %46 = arith.addf %44, %45 : vector<2x32xf32>
    %47 = math.tanh %46 : vector<2x32xf32>
    %48 = vector.extract_strided_slice %11 {offsets = [0, 7, 0], sizes = [2, 1, 32], strides = [1, 1, 1]} : vector<2x8x32xf32> to vector<2x1x32xf32>
    %49 = vector.shape_cast %48 : vector<2x1x32xf32> to vector<2x32xf32>
    %cst_18 = arith.constant dense<0.000000e+00> : vector<2x32xf32>
    %50 = tpu.matmul %47, %4, %cst_18 {dimension_numbers = #tpu.dot_dimension_numbers<[1], [0], [0], [1], [0, 0, 1, 1], [], []>} : vector<2x32xf32>, vector<32x32xf32>, vector<2x32xf32> -> vector<2x32xf32>
    %51 = arith.addf %49, %50 : vector<2x32xf32>
    %52 = math.tanh %51 : vector<2x32xf32>
    %c0_19 = arith.constant 0 : index
    %c0_20 = arith.constant 0 : index
    %53 = vector.load %arg10[%c0_19, %c0_20] : memref<2x32xf32, #tpu.memory_space<vmem>>, vector<2x32xf32>
    tpu.vector_store %arg10[%c0_19, %c0_20], %52 {strides = array<i32>} : memref<2x32xf32, #tpu.memory_space<vmem>>, vector<2x32xf32>,
    %c1_i32 = arith.constant 1 : i32
    %54 = arith.cmpi eq, %arg0, %c1_i32 : i32
    %55 = arith.extui %54 : i1 to i32
    %c0_i32_21 = arith.constant 0 : i32
    %56 = arith.cmpi ne, %55, %c0_i32_21 : i32
    scf.if %56 {
      %c0_22 = arith.constant 0 : index
      %c0_23 = arith.constant 0 : index
      %57 = vector.load %arg5[%c0_22, %c0_23] : memref<32x32xf32, #tpu.memory_space<vmem>>, vector<32x32xf32>
      %cst_24 = arith.constant dense<0.000000e+00> : vector<2x32xf32>
      %58 = tpu.matmul %52, %57, %cst_24 {dimension_numbers = #tpu.dot_dimension_numbers<[1], [0], [0], [1], [0, 0, 1, 1], [], []>} : vector<2x32xf32>, vector<32x32xf32>, vector<2x32xf32> -> vector<2x32xf32>
      %c0_25 = arith.constant 0 : index
      %c0_26 = arith.constant 0 : index
      %59 = vector.load %arg6[%c0_25, %c0_26] : memref<1x32xf32, #tpu.memory_space<vmem>>, vector<1x32xf32>
      %60 = vector.broadcast %59 : vector<1x32xf32> to vector<2x32xf32>
      %61 = arith.addf %58, %60 : vector<2x32xf32>
      %c0_27 = arith.constant 0 : index
      %c0_28 = arith.constant 0 : index
      %62 = vector.load %arg7[%c0_27, %c0_28] : memref<32x4xf32, #tpu.memory_space<vmem>>, vector<32x4xf32>
      %cst_29 = arith.constant dense<0.000000e+00> : vector<2x4xf32>
      %63 = tpu.matmul %61, %62, %cst_29 {dimension_numbers = #tpu.dot_dimension_numbers<[1], [0], [0], [1], [0, 0, 1, 1], [], []>} : vector<2x32xf32>, vector<32x4xf32>, vector<2x4xf32> -> vector<2x4xf32>
      %c0_30 = arith.constant 0 : index
      %c0_31 = arith.constant 0 : index
      %64 = vector.load %arg8[%c0_30, %c0_31] : memref<1x4xf32, #tpu.memory_space<vmem>>, vector<1x4xf32>
      %65 = vector.broadcast %64 : vector<1x4xf32> to vector<2x4xf32>
      %66 = arith.addf %63, %65 : vector<2x4xf32>
      %c0_32 = arith.constant 0 : index
      %c0_33 = arith.constant 0 : index
      %67 = vector.load %arg9[%c0_32, %c0_33] : memref<2x4xf32, #tpu.memory_space<vmem>>, vector<2x4xf32>
      tpu.vector_store %arg9[%c0_32, %c0_33], %66 {strides = array<i32>} : memref<2x4xf32, #tpu.memory_space<vmem>>, vector<2x4xf32>,
    } else {
    }
    return
  }
  func.func @transform_0(%arg0: i32) -> (i32, i32, i32) {
    %c0_i32 = arith.constant 0 : i32
    %c0_i32_0 = arith.constant 0 : i32
    %c0_i32_1 = arith.constant 0 : i32
    return %c0_i32, %arg0, %c0_i32_0 : i32, i32, i32
  }
  func.func @transform_1(%arg0: i32) -> (i32, i32) {
    %c0_i32 = arith.constant 0 : i32
    %c0_i32_0 = arith.constant 0 : i32
    %c0_i32_1 = arith.constant 0 : i32
    return %c0_i32, %c0_i32_0 : i32, i32
  }
  func.func @transform_2(%arg0: i32) -> (i32, i32) {
    %c0_i32 = arith.constant 0 : i32
    %c0_i32_0 = arith.constant 0 : i32
    %c0_i32_1 = arith.constant 0 : i32
    return %c0_i32, %c0_i32_0 : i32, i32
  }
  func.func @transform_3(%arg0: i32) -> (i32, i32) {
    %c0_i32 = arith.constant 0 : i32
    %c0_i32_0 = arith.constant 0 : i32
    %c0_i32_1 = arith.constant 0 : i32
    return %c0_i32, %c0_i32_0 : i32, i32
  }
  func.func @transform_4(%arg0: i32) -> (i32, i32) {
    %c0_i32 = arith.constant 0 : i32
    %c0_i32_0 = arith.constant 0 : i32
    %c0_i32_1 = arith.constant 0 : i32
    return %c0_i32, %c0_i32_0 : i32, i32
  }
  func.func @transform_5(%arg0: i32) -> (i32, i32) {
    %c0_i32 = arith.constant 0 : i32
    %c0_i32_0 = arith.constant 0 : i32
    %c0_i32_1 = arith.constant 0 : i32
    return %c0_i32, %c0_i32_0 : i32, i32
  }
  func.func @transform_6(%arg0: i32) -> (i32, i32) {
    %c0_i32 = arith.constant 0 : i32
    %c0_i32_0 = arith.constant 0 : i32
    %c0_i32_1 = arith.constant 0 : i32
    return %c0_i32, %c0_i32_0 : i32, i32
  }
  func.func @transform_7(%arg0: i32) -> (i32, i32) {
    %c0_i32 = arith.constant 0 : i32
    %c0_i32_0 = arith.constant 0 : i32
    %c0_i32_1 = arith.constant 0 : i32
    return %c0_i32, %c0_i32_0 : i32, i32
  }
  func.func @transform_8(%arg0: i32) -> (i32, i32) {
    %c0_i32 = arith.constant 0 : i32
    %c0_i32_0 = arith.constant 0 : i32
    %c0_i32_1 = arith.constant 0 : i32
    return %c0_i32, %c0_i32_0 : i32, i32
  }
}

</mosaic_0001>

<llo_original>
// kernel: vanilla_rnn_classifier.1
$region0: #{vanilla_rnn_classifier.1}
  #allocation0 [shape = 'u32[]', space=smem, size = 0x4, offset = 0x4, fixed_abs, tag = 'smem constant byte address 0x4 - core index']
  #allocation1 [shape = 'u32[144,128]{1,0:T(1,128)}', space=vmem, size = 0x12000, scoped, tag = 'internal scratch']
  #allocation2 [shape = 'f32[2,32]{1,0:T(2,128)}', space=vmem, size = 0x400, scoped, tag = 'scratch operand']
  %s0 = inlined_call_operand.vmem [shape: f32[2,16,16], index: 0, kind: input, shape index: {}]
  %s1 = inlined_call_operand.hbm [shape: f32[16,32], index: 1, kind: input, shape index: {}]
  %s2 = inlined_call_operand.hbm [shape: f32[32,32], index: 2, kind: input, shape index: {}]
  %s3 = inlined_call_operand.vmem [shape: f32[1,32], index: 3, kind: input, shape index: {}]
  %s4 = inlined_call_operand.hbm [shape: f32[32,32], index: 4, kind: input, shape index: {}]
  %s5 = inlined_call_operand.vmem [shape: f32[1,32], index: 5, kind: input, shape index: {}]
  %s6 = inlined_call_operand.vmem [shape: f32[32,4], index: 6, kind: input, shape index: {}]
  %s7 = inlined_call_operand.vmem [shape: f32[1,4], index: 7, kind: input, shape index: {}]
  %s8 = inlined_call_operand.hbm [shape: f32[2,4], index: 8, kind: output, shape index: {}]
  %s9 = sld [smem:[#allocation0]]
  $region123: #{vanilla_rnn_classifier.1} parent=0
    _
  %s11 = ssub.s32 1, %s9
  %s12 = scalar_select 0, %s11, %s9
  $region1: #{vanilla_rnn_classifier.1} parent=0
    #allocation3 [shape = 'u8[16384]{0}', space=vmem, size = 0x4000, scoped, tag = 'input window, operand 0']
    #allocation4 [shape = 'u8[8192]{0}', space=vmem, size = 0x2000, scoped, tag = 'input window, operand 1, single buffered']
    #allocation5 [shape = 's32[2]{0}', space=sflag, size = 0x8, scoped, tag = 'scoped memory for vanilla_rnn_classifier.1']
    #allocation6 [shape = 's32[2]{0}', space=sflag, size = 0x8, scoped, tag = 'scoped memory for vanilla_rnn_classifier.1']
    #allocation7 [shape = 'u8[16384]{0}', space=vmem, size = 0x4000, scoped, tag = 'input window, operand 2, single buffered']
    #allocation8 [shape = 's32[1]{0}', space=sflag, size = 0x4, scoped, tag = 'scoped memory for vanilla_rnn_classifier.1']
    #allocation9 [shape = 'u8[16384]{0}', space=vmem, size = 0x4000, scoped, tag = 'input window, operand 4, single buffered']
    #allocation10 [shape = 'u8[1024]{0}', space=vmem, size = 0x400, scoped, tag = 'output window, operand 0, single buffered']
    %13 = vsyncpa [#allocation5], 0
    %14 = vsyncpa [#allocation8], 0
    %15 = vsyncpa [#allocation6], 0
    loop: start=0, step=1, limit=4
    $region2: #{vanilla_rnn_classifier.1} parent=1 // loop_pre_header
      _
    $region3: #{vanilla_rnn_classifier.1} parent=1 // loop_header
      %s17 = sphi 0, %s21
      %p18 = scmp.ge.s32.totalorder %s17, 4
      %s27 = sphi 0, %s29
      %s30 = sphi 0, %s27
      %s31 = sphi 0, %s30
      %s47 = sphi 0, %s31
      %s51 = sphi 0, %s51
      %s53 = sphi 0, %s51
      %s54 = sphi 0, %s53
      %s68 = sphi 0, %s54
      %s72 = sphi 0, %s72
      %s74 = sphi 0, %s72
      %s75 = sphi 0, %s74
      %s89 = sphi 0, %s75
      %s93 = sphi 0, %s93
      %s95 = sphi 0, %s93
      %s96 = sphi 0, %s95
      %s110 = sphi 0, %s96
      %s114 = sphi 0, %s114
      %s116 = sphi 0, %s114
      %s117 = sphi 0, %s116
      %s131 = sphi 0, %s117
      %s135 = sphi 0, %s135
      %s137 = sphi 0, %s135
      %s138 = sphi 0, %s137
      %s152 = sphi 0, %s138
      %s156 = sphi 0, %s156
      %s158 = sphi 0, %s156
      %s159 = sphi 0, %s158
      %s173 = sphi 0, %s159
      %s177 = sphi 0, %s177
      %s179 = sphi 0, %s177
      %s180 = sphi 0, %s179
      %s194 = sphi 0, %s180
      %s198 = sphi 0, %s198
      %s200 = sphi 0, %s198
      %s201 = sphi 0, %s200
      %s215 = sphi 0, %s201
    $region4: #{vanilla_rnn_classifier.1} parent=1 // loop_header_branch
      %20 = sbr.rel (%p18) target = $region8
    $region5: #{vanilla_rnn_classifier.1} parent=1 // loop_body
      %s22 = ssub.s32 %s17, 1
      %s23 = ssub.s32 %s17, 2
      %s24 = sadd.s32 %s17, 1
      %s25 = ssub.s32 %s17, %s24
      %p26 = scmp.eq.s32.totalorder %s25, 0
      %s28 = sadd.s32 %s27, 1
      %s29 = scalar_select %p26, %s27, %s28
      %p32 = pneg %p26
      %p33 = scmp.eq.s32.totalorder %s17, 1
      %p34 = por %p32, %p33
      %p35 = scmp.ne.s32.totalorder %s27, %s30
      %p36 = scmp.eq.s32.totalorder %s17, 0
      %p37 = por %p35, %p36
      %p38 = scmp.ne.s32.totalorder %s27, %s30
      %p39 = scmp.eq.s32.totalorder %s22, 1
      %p40 = por %p38, %p39
      %p41 = scmp.ne.s32.totalorder %s30, %s31
      %p42 = scmp.eq.s32.totalorder %s22, 0
      %p43 = por %p41, %p42
      %p44 = scmp.ne.s32.totalorder %s30, %s31
      %p45 = scmp.eq.s32.totalorder %s23, 1
      %p46 = por %p44, %p45
      %p48 = scmp.ne.s32.totalorder %s31, %s47
      %p49 = scmp.eq.s32.totalorder %s23, 0
      %p50 = por %p48, %p49
      %s52 = sadd.s32 %s51, 1
      %p55 = scmp.eq.s32.totalorder %s17, 1
      %p56 = scmp.ne.s32.totalorder %s51, %s53
      %p57 = scmp.eq.s32.totalorder %s17, 0
      %p58 = por %p56, %p57
      %p59 = scmp.ne.s32.totalorder %s51, %s53
      %p60 = scmp.eq.s32.totalorder %s22, 1
      %p61 = por %p59, %p60
      %p62 = scmp.ne.s32.totalorder %s53, %s54
      %p63 = scmp.eq.s32.totalorder %s22, 0
      %p64 = por %p62, %p63
      %p65 = scmp.ne.s32.totalorder %s53, %s54
      %p66 = scmp.eq.s32.totalorder %s23, 1
      %p67 = por %p65, %p66
      %p69 = scmp.ne.s32.totalorder %s54, %s68
      %p70 = scmp.eq.s32.totalorder %s23, 0
      %p71 = por %p69, %p70
      %s73 = sadd.s32 %s72, 1
      %p76 = scmp.eq.s32.totalorder %s17, 1
      %p77 = scmp.ne.s32.totalorder %s72, %s74
      %p78 = scmp.eq.s32.totalorder %s17, 0
      %p79 = por %p77, %p78
      %p80 = scmp.ne.s32.totalorder %s72, %s74
      %p81 = scmp.eq.s32.totalorder %s22, 1
      %p82 = por %p80, %p81
      %p83 = scmp.ne.s32.totalorder %s74, %s75
      %p84 = scmp.eq.s32.totalorder %s22, 0
      %p85 = por %p83, %p84
      %p86 = scmp.ne.s32.totalorder %s74, %s75
      %p87 = scmp.eq.s32.totalorder %s23, 1
      %p88 = por %p86, %p87
      %p90 = scmp.ne.s32.totalorder %s75, %s89
      %p91 = scmp.eq.s32.totalorder %s23, 0
      %p92 = por %p90, %p91
      %s94 = sadd.s32 %s93, 1
      %p97 = scmp.eq.s32.totalorder %s17, 1
      %p98 = scmp.ne.s32.totalorder %s93, %s95
      %p99 = scmp.eq.s32.totalorder %s17, 0
      %p100 = por %p98, %p99
      %p101 = scmp.ne.s32.totalorder %s93, %s95
      %p102 = scmp.eq.s32.totalorder %s22, 1
      %p103 = por %p101, %p102
      %p104 = scmp.ne.s32.totalorder %s95, %s96
      %p105 = scmp.eq.s32.totalorder %s22, 0
      %p106 = por %p104, %p105
      %p107 = scmp.ne.s32.totalorder %s95, %s96
      %p108 = scmp.eq.s32.totalorder %s23, 1
      %p109 = por %p107, %p108
      %p111 = scmp.ne.s32.totalorder %s96, %s110
      %p112 = scmp.eq.s32.totalorder %s23, 0
      %p113 = por %p111, %p112
      %s115 = sadd.s32 %s114, 1
      %p118 = scmp.eq.s32.totalorder %s17, 1
      %p119 = scmp.ne.s32.totalorder %s114, %s116
      %p120 = scmp.eq.s32.totalorder %s17, 0
      %p121 = por %p119, %p120
      %p122 = scmp.ne.s32.totalorder %s114, %s116
      %p123 = scmp.eq.s32.totalorder %s22, 1
      %p124 = por %p122, %p123
      %p125 = scmp.ne.s32.totalorder %s116, %s117
      %p126 = scmp.eq.s32.totalorder %s22, 0
      %p127 = por %p125, %p126
      %p128 = scmp.ne.s32.totalorder %s116, %s117
      %p129 = scmp.eq.s32.totalorder %s23, 1
      %p130 = por %p128, %p129
      %p132 = scmp.ne.s32.totalorder %s117, %s131
      %p133 = scmp.eq.s32.totalorder %s23, 0
      %p134 = por %p132, %p133
      %s136 = sadd.s32 %s135, 1
      %p139 = scmp.eq.s32.totalorder %s17, 1
      %p140 = scmp.ne.s32.totalorder %s135, %s137
      %p141 = scmp.eq.s32.totalorder %s17, 0
      %p142 = por %p140, %p141
      %p143 = scmp.ne.s32.totalorder %s135, %s137
      %p144 = scmp.eq.s32.totalorder %s22, 1
      %p145 = por %p143, %p144
      %p146 = scmp.ne.s32.totalorder %s137, %s138
      %p147 = scmp.eq.s32.totalorder %s22, 0
      %p148 = por %p146, %p147
      %p149 = scmp.ne.s32.totalorder %s137, %s138
      %p150 = scmp.eq.s32.totalorder %s23, 1
      %p151 = por %p149, %p150
      %p153 = scmp.ne.s32.totalorder %s138, %s152
      %p154 = scmp.eq.s32.totalorder %s23, 0
      %p155 = por %p153, %p154
      %s157 = sadd.s32 %s156, 1
      %p160 = scmp.eq.s32.totalorder %s17, 1
      %p161 = scmp.ne.s32.totalorder %s156, %s158
      %p162 = scmp.eq.s32.totalorder %s17, 0
      %p163 = por %p161, %p162
      %p164 = scmp.ne.s32.totalorder %s156, %s158
      %p165 = scmp.eq.s32.totalorder %s22, 1
      %p166 = por %p164, %p165
      %p167 = scmp.ne.s32.totalorder %s158, %s159
      %p168 = scmp.eq.s32.totalorder %s22, 0
      %p169 = por %p167, %p168
      %p170 = scmp.ne.s32.totalorder %s158, %s159
      %p171 = scmp.eq.s32.totalorder %s23, 1
      %p172 = por %p170, %p171
      %p174 = scmp.ne.s32.totalorder %s159, %s173
      %p175 = scmp.eq.s32.totalorder %s23, 0
      %p176 = por %p174, %p175
      %s178 = sadd.s32 %s177, 1
      %p181 = scmp.eq.s32.totalorder %s17, 1
      %p182 = scmp.ne.s32.totalorder %s177, %s179
      %p183 = scmp.eq.s32.totalorder %s17, 0
      %p184 = por %p182, %p183
      %p185 = scmp.ne.s32.totalorder %s177, %s179
      %p186 = scmp.eq.s32.totalorder %s22, 1
      %p187 = por %p185, %p186
      %p188 = scmp.ne.s32.totalorder %s179, %s180
      %p189 = scmp.eq.s32.totalorder %s22, 0
      %p190 = por %p188, %p189
      %p191 = scmp.ne.s32.totalorder %s179, %s180
      %p192 = scmp.eq.s32.totalorder %s23, 1
      %p193 = por %p191, %p192
      %p195 = scmp.ne.s32.totalorder %s180, %s194
      %p196 = scmp.eq.s32.totalorder %s23, 0
      %p197 = por %p195, %p196
      %s199 = sadd.s32 %s198, 1
      %p202 = scmp.eq.s32.totalorder %s17, 1
      %p203 = scmp.ne.s32.totalorder %s198, %s200
      %p204 = scmp.eq.s32.totalorder %s17, 0
      %p205 = por %p203, %p204
      %p206 = scmp.ne.s32.totalorder %s198, %s200
      %p207 = scmp.eq.s32.totalorder %s22, 1
      %p208 = por %p206, %p207
      %p209 = scmp.ne.s32.totalorder %s200, %s201
      %p210 = scmp.eq.s32.totalorder %s22, 0
      %p211 = por %p209, %p210
      %p212 = scmp.ne.s32.totalorder %s200, %s201
      %p213 = scmp.eq.s32.totalorder %s23, 1
      %p214 = por %p212, %p213
      %p216 = scmp.ne.s32.totalorder %s201, %s215
      %p217 = scmp.eq.s32.totalorder %s23, 0
      %p218 = por %p216, %p217
      %p219 = scmp.le.s32.totalorder 1, %s17
      %p220 = scmp.lt.s32.totalorder %s17, 3
      %p221 = pnand %p219, %p220
      %p222 = pneg %p221
      // Predicated region
      $region9: #{vanilla_rnn_classifier.1} parent=5 // pred_check
        _
      $region10: #{vanilla_rnn_classifier.1} parent=5 // pred_check_branch
        %224 = sbr.rel (%p221) target = $region12
      $region11: #{vanilla_rnn_classifier.1} parent=5 // pred_region
        %s225 = ssub.s32 %s17, 1
        // Predicated region
        $region13: #{vanilla_rnn_classifier.1} parent=11 // pred_check
          %p226 = pneg %p64
        $region14: #{vanilla_rnn_classifier.1} parent=11 // pred_check_branch
          %228 = sbr.rel (%p226) target = $region16
        $region15: #{vanilla_rnn_classifier.1} parent=11 // pred_region
          %s230 = ssub.s32 256, 256
          %231 = vsyncadd [#allocation5], %s230
          %s232 = sshll.u32 [#allocation4], 4
          %s233 = int_to_ptr.vmem [resolvable:$true] %s232
          %238 = dma.hbm_to_vmem [thread:$0]  %s1, 256, %s233, [#allocation5], 128, 128, 8
        $region16: #{vanilla_rnn_classifier.1} parent=11 // pred_fallthru
          _
        // Predicated region
        $region17: #{vanilla_rnn_classifier.1} parent=11 // pred_check
          %p239 = pneg %p85
        $region18: #{vanilla_rnn_classifier.1} parent=11 // pred_check_branch
          %241 = sbr.rel (%p239) target = $region20
        $region19: #{vanilla_rnn_classifier.1} parent=11 // pred_region
          %s243 = ssub.s32 512, 512
          %244 = vsyncadd [#allocation8], %s243
          %s245 = sshll.u32 [#allocation7], 4
          %s246 = int_to_ptr.vmem [resolvable:$true] %s245
          %251 = dma.hbm_to_vmem [thread:$0]  %s2, 512, %s246, [#allocation8], 128, 128, 8
        $region20: #{vanilla_rnn_classifier.1} parent=11 // pred_fallthru
          _
        // Predicated region
        $region21: #{vanilla_rnn_classifier.1} parent=11 // pred_check
          %p252 = pneg %p106
        $region22: #{vanilla_rnn_classifier.1} parent=11 // pred_check_branch
          %254 = sbr.rel (%p252) target = $region24
        $region23: #{vanilla_rnn_classifier.1} parent=11 // pred_region
          _
        $region24: #{vanilla_rnn_classifier.1} parent=11 // pred_fallthru
          _
        // Predicated region
        $region25: #{vanilla_rnn_classifier.1} parent=11 // pred_check
          %p255 = pneg %p127
        $region26: #{vanilla_rnn_classifier.1} parent=11 // pred_check_branch
          %257 = sbr.rel (%p255) target = $region28
        $region27: #{vanilla_rnn_classifier.1} parent=11 // pred_region
          %s259 = ssub.s32 512, 512
          %260 = vsyncadd [#allocation8], %s259
          %s261 = sshll.u32 [#allocation9], 4
          %s262 = int_to_ptr.vmem [resolvable:$true] %s261
          %267 = dma.hbm_to_vmem [thread:$0]  %s4, 512, %s262, [#allocation8], 128, 128, 8
        $region28: #{vanilla_rnn_classifier.1} parent=11 // pred_fallthru
          _
        // Predicated region
        $region29: #{vanilla_rnn_classifier.1} parent=11 // pred_check
          %p268 = pneg %p148
        $region30: #{vanilla_rnn_classifier.1} parent=11 // pred_check_branch
          %270 = sbr.rel (%p268) target = $region32
        $region31: #{vanilla_rnn_classifier.1} parent=11 // pred_region
          _
        $region32: #{vanilla_rnn_classifier.1} parent=11 // pred_fallthru
          _
        // Predicated region
        $region33: #{vanilla_rnn_classifier.1} parent=11 // pred_check
          %p271 = pneg %p169
        $region34: #{vanilla_rnn_classifier.1} parent=11 // pred_check_branch
          %273 = sbr.rel (%p271) target = $region36
        $region35: #{vanilla_rnn_classifier.1} parent=11 // pred_region
          _
        $region36: #{vanilla_rnn_classifier.1} parent=11 // pred_fallthru
          _
        // Predicated region
        $region37: #{vanilla_rnn_classifier.1} parent=11 // pred_check
          %p274 = pneg %p190
        $region38: #{vanilla_rnn_classifier.1} parent=11 // pred_check_branch
          %276 = sbr.rel (%p274) target = $region40
        $region39: #{vanilla_rnn_classifier.1} parent=11 // pred_region
          _
        $region40: #{vanilla_rnn_classifier.1} parent=11 // pred_fallthru
          _
      $region12: #{vanilla_rnn_classifier.1} parent=5 // pred_fallthru
        _
      %p277 = scmp.lt.s32.totalorder %s17, 2
      // Predicated region
      $region41: #{vanilla_rnn_classifier.1} parent=5 // pred_check
        %p278 = pneg %p277
      $region42: #{vanilla_rnn_classifier.1} parent=5 // pred_check_branch
        %280 = sbr.rel (%p278) target = $region44
      $region43: #{vanilla_rnn_classifier.1} parent=5 // pred_region
        // Predicated region
        $region45: #{vanilla_rnn_classifier.1} parent=43 // pred_check
          %p281 = pneg %p37
        $region46: #{vanilla_rnn_classifier.1} parent=43 // pred_check_branch
          %283 = sbr.rel (%p281) target = $region48
        $region47: #{vanilla_rnn_classifier.1} parent=43 // pred_region
          %s284 = sand.u32 %s27, 1
          %s285 = sand.u32 %s27, 1
          %s286 = smul.addr %s285, 16
          %s287 = scalar_lea.vmem [#allocation3], %s286
          %s288 = smul.addr %s17, 8
          %s289 = scalar_lea.vmem %s0, %s288
          // Predicated region
          $region49: #{vanilla_rnn_classifier.1} parent=47 // pred_check
            _
          $region50: #{vanilla_rnn_classifier.1} parent=47 // pred_check_branch
            %291 = sbr.rel (0) target = $region52
          $region51: #{vanilla_rnn_classifier.1} parent=47 // pred_region
            // Predicated region
            $region53: #{vanilla_rnn_classifier.1} parent=51 // pred_check
              _
            $region54: #{vanilla_rnn_classifier.1} parent=51 // pred_check_branch
              %293 = sbr.rel (0) target = $region56
            $region55: #{vanilla_rnn_classifier.1} parent=51 // pred_region
              // Predicated region
              $region68: #{vanilla_rnn_classifier.1} parent=55 // pred_check
                _
              $region69: #{vanilla_rnn_classifier.1} parent=55 // pred_check_branch
                %311 = sbr.rel (0) target = $region71
              $region70: #{vanilla_rnn_classifier.1} parent=55 // pred_region
                loop: start=0, step=1, limit=1
                $region72: #{vanilla_rnn_classifier.1} parent=70 // loop_pre_header
                  _
                $region73: #{vanilla_rnn_classifier.1} parent=70 // loop_header
                  %s313 = sphi 0, %s317
                  %p314 = scmp.ge.s32.totalorder %s313, 1
                  %s318 = sphi %s289, %s289
                  %s319 = sphi %s287, %s287
                $region74: #{vanilla_rnn_classifier.1} parent=70 // loop_header_branch
                  %316 = sbr.rel (%p314) target = $region78
                $region75: #{vanilla_rnn_classifier.1} parent=70 // loop_body
                  %v320 = vld [vmem:[%s318] sm:$0xff]
                  %321 = vst [vmem:[%s319] sm:$0xff] %v320
                  %v322 = vld [vmem:[%s318 + $0x10] sm:$0xff]
                  %323 = vst [vmem:[%s319 + $0x8] sm:$0xff] %v322
                $region76: #{vanilla_rnn_classifier.1} parent=70 // loop_footer
                  %s317 = sadd.s32 1, %s313
                $region77: #{vanilla_rnn_classifier.1} parent=70 // loop_footer_branch
                  %312 = sbr.rel target = $region73
                $region78: #{vanilla_rnn_classifier.1} parent=70 // loop_exit
                  _
              $region71: #{vanilla_rnn_classifier.1} parent=55 // pred_fallthru
                _
              // Predicated region
              $region79: #{vanilla_rnn_classifier.1} parent=55 // pred_check
                _
              $region80: #{vanilla_rnn_classifier.1} parent=55 // pred_check_branch
                %325 = sbr.rel target = $region82
              $region81: #{vanilla_rnn_classifier.1} parent=55 // pred_region
                _
              $region82: #{vanilla_rnn_classifier.1} parent=55 // pred_fallthru
                _
            $region56: #{vanilla_rnn_classifier.1} parent=51 // pred_fallthru
              _
            // Predicated region
            $region57: #{vanilla_rnn_classifier.1} parent=51 // pred_check
              _
            $region58: #{vanilla_rnn_classifier.1} parent=51 // pred_check_branch
              %295 = sbr.rel target = $region60
            $region59: #{vanilla_rnn_classifier.1} parent=51 // pred_region
              %s297 = ssub.s32 256, 1
              loop: start=0, step=1, limit=1
              $region61: #{vanilla_rnn_classifier.1} parent=59 // loop_pre_header
                _
              $region62: #{vanilla_rnn_classifier.1} parent=59 // loop_header
                %s299 = sphi 0, %s303
                %p300 = scmp.ge.s32.totalorder %s299, 1
                %s304 = sphi %s289, %s289
                %s305 = sphi %s287, %s287
              $region63: #{vanilla_rnn_classifier.1} parent=59 // loop_header_branch
                %302 = sbr.rel (%p300) target = $region67
              $region64: #{vanilla_rnn_classifier.1} parent=59 // loop_body
                %v306 = vld [vmem:[%s304] sm:%s297]
                %307 = vst [vmem:[%s305] sm:%s297] %v306
                %v308 = vld [vmem:[%s304 + $0x10] sm:%s297]
                %309 = vst [vmem:[%s305 + $0x8] sm:%s297] %v308
              $region65: #{vanilla_rnn_classifier.1} parent=59 // loop_footer
                %s303 = sadd.s32 1, %s299
              $region66: #{vanilla_rnn_classifier.1} parent=59 // loop_footer_branch
                %298 = sbr.rel target = $region62
              $region67: #{vanilla_rnn_classifier.1} parent=59 // loop_exit
                _
            $region60: #{vanilla_rnn_classifier.1} parent=51 // pred_fallthru
              _
          $region52: #{vanilla_rnn_classifier.1} parent=47 // pred_fallthru
            _
          %326 = vnop
        $region48: #{vanilla_rnn_classifier.1} parent=43 // pred_fallthru
          _
      $region44: #{vanilla_rnn_classifier.1} parent=5 // pred_fallthru
        _
      %p327 = scmp.le.s32.totalorder 1, %s17
      %p328 = scmp.lt.s32.totalorder %s17, 3
      %p329 = pnand %p327, %p328
      %p330 = pneg %p329
      // Predicated region
      $region83: #{vanilla_rnn_classifier.1} parent=5 // pred_check
        _
      $region84: #{vanilla_rnn_classifier.1} parent=5 // pred_check_branch
        %332 = sbr.rel (%p329) target = $region86
      $region85: #{vanilla_rnn_classifier.1} parent=5 // pred_region
        %s333 = ssub.s32 %s17, 1
        %s334 = sand.u32 %s30, 1
        %s335 = sand.u32 %s30, 1
        %s336 = smul.addr %s335, 16
        %s337 = scalar_lea.vmem [#allocation3], %s336
        // Predicated region
        $region87: #{vanilla_rnn_classifier.1} parent=85 // pred_check
          %p338 = pneg %p43
        $region88: #{vanilla_rnn_classifier.1} parent=85 // pred_check_branch
          %340 = sbr.rel (%p338) target = $region90
        $region89: #{vanilla_rnn_classifier.1} parent=85 // pred_region
          _
        $region90: #{vanilla_rnn_classifier.1} parent=85 // pred_fallthru
          _
        // Predicated region
        $region91: #{vanilla_rnn_classifier.1} parent=85 // pred_check
          %p341 = pneg %p64
        $region92: #{vanilla_rnn_classifier.1} parent=85 // pred_check_branch
          %343 = sbr.rel (%p341) target = $region94
        $region93: #{vanilla_rnn_classifier.1} parent=85 // pred_region
          %344 = dma.done [#allocation5], 256
        $region94: #{vanilla_rnn_classifier.1} parent=85 // pred_fallthru
          _
        // Predicated region
        $region95: #{vanilla_rnn_classifier.1} parent=85 // pred_check
          %p345 = pneg %p85
        $region96: #{vanilla_rnn_classifier.1} parent=85 // pred_check_branch
          %347 = sbr.rel (%p345) target = $region98
        $region97: #{vanilla_rnn_classifier.1} parent=85 // pred_region
          %348 = dma.done [#allocation8], 512
        $region98: #{vanilla_rnn_classifier.1} parent=85 // pred_fallthru
          _
        // Predicated region
        $region99: #{vanilla_rnn_classifier.1} parent=85 // pred_check
          %p349 = pneg %p127
        $region100: #{vanilla_rnn_classifier.1} parent=85 // pred_check_branch
          %351 = sbr.rel (%p349) target = $region102
        $region101: #{vanilla_rnn_classifier.1} parent=85 // pred_region
          %352 = dma.done [#allocation8], 512
        $region102: #{vanilla_rnn_classifier.1} parent=85 // pred_fallthru
          _
        %s353 = sand.u32 %s30, 1
        %s354 = sand.u32 %s30, 1
        %s355 = smul.addr %s354, 16
        %s356 = scalar_lea.vmem [#allocation3], %s355
        %p357 = pneg %p43
        %p358 = pneg %p40
        %p359 = pneg %p64
        %p360 = pneg %p61
        %p361 = pneg %p85
        %p362 = pneg %p82
        %p363 = pneg %p106
        %p364 = pneg %p103
        %p365 = pneg %p127
        %p366 = pneg %p124
        %p367 = pneg %p148
        %p368 = pneg %p145
        %p369 = pneg %p169
        %p370 = pneg %p166
        %p371 = pneg %p190
        %p372 = pneg %p187
        %p373 = pneg %p211
        %p374 = pneg %p208
        %p375 = scmp.eq.s32.totalorder %s22, 0
        // Predicated region
        $region103: #{vanilla_rnn_classifier.1} parent=85 // pred_check
          %p376 = pneg %p375
        $region104: #{vanilla_rnn_classifier.1} parent=85 // pred_check_branch
          %378 = sbr.rel (%p376) target = $region106
        $region105: #{vanilla_rnn_classifier.1} parent=85 // pred_region
          %vm379 = vcmask 254976
          %380 = vst.msk [vmem:[#allocation2] sm:$0x3] %vm379, 0.0
        $region106: #{vanilla_rnn_classifier.1} parent=85 // pred_fallthru
          _
        %v381 = vld [vmem:[#allocation4] sm:$0xff]
        %v382 = vld [vmem:[#allocation4 + $0x8] sm:$0xff]
        %v383 = vld [vmem:[#allocation7] sm:$0xff]
        %v384 = vld [vmem:[#allocation7 + $0x8] sm:$0xff]
        %v385 = vld [vmem:[#allocation7 + $0x10] sm:$0xff]
        %v386 = vld [vmem:[#allocation7 + $0x18] sm:$0xff]
        %v387 = vld [vmem:[%s3] sm:$0x1]
        %v388 = vld [vmem:[%s337] sm:$0xff]
        %v389 = vld [vmem:[%s337 + $0x8] sm:$0xff]
        %v391 = vlaneseq
        %v392 = vshrl.u32 %v391, 7
        %v393 = vsub.s32 0, %v392
        %v394 = vrot.slane %v387, %v393
        %vm396 = vcmask 130048
        %v398 = vsel %vm396, %v388, 0
        %v401 = vsel %vm396, %v389, 0
        %403 = vmatprep.subr.mxu0 0.0
        %404 = vmatpush1.msra.mxu0 0.0
        %405 = vmatprep.subr.mxu0 0.0
        %406 = vmatpush1.msra.mxu0 0.0
        %407 = vmatprep.subr.mxu0 0.0
        %408 = vmatpush1.msra.mxu0 0.0
        %409 = vmatprep.subr.mxu0 0.0
        %410 = vmatpush1.msra.mxu0 0.0
        %411 = vmatprep.subr.mxu0 0.0
        %412 = vmatpush1.msra.mxu0 0.0
        %413 = vmatprep.subr.mxu0 0.0
        %414 = vmatpush1.msra.mxu0 0.0
        %415 = vmatprep.subr.mxu0 0.0
        %416 = vmatpush1.msra.mxu0 0.0
        %417 = vmatprep.subr.mxu0 0.0
        %418 = vmatpush1.msra.mxu0 0.0
        %419 = vmatprep.subr.mxu0 0.0
        %420 = vmatpush1.msra.mxu0 0.0
        %421 = vmatprep.subr.mxu0 0.0
        %422 = vmatpush1.msra.mxu0 0.0
        %423 = vmatprep.subr.mxu0 0.0
        %424 = vmatpush1.msra.mxu0 0.0
        %425 = vmatprep.subr.mxu0 0.0
        %426 = vmatpush1.msra.mxu0 0.0
        %427 = vmatprep.subr.mxu0 0.0
        %428 = vmatpush1.msra.mxu0 0.0
        %429 = vmatprep.subr.mxu0 0.0
        %430 = vmatpush1.msra.mxu0 0.0
        %431 = vmatprep.subr.mxu0 0.0
        %432 = vmatpush1.msra.mxu0 %v382
        %433 = vmatprep.subr.mxu0 0.0
        %434 = vmatpush1.msra.mxu0 %v381
        %435 = vmatprep.subr.mxu0 0.0
        %436 = vmatpush2.msra.mxu0 0.0
        %437 = vmatprep.subr.mxu0 0.0
        %438 = vmatpush2.msra.mxu0 0.0
        %439 = vmatprep.subr.mxu0 0.0
        %440 = vmatpush2.msra.mxu0 0.0
        %441 = vmatprep.subr.mxu0 0.0
        %442 = vmatpush2.msra.mxu0 0.0
        %443 = vmatprep.subr.mxu0 0.0
        %444 = vmatpush2.msra.mxu0 0.0
        %445 = vmatprep.subr.mxu0 0.0
        %446 = vmatpush2.msra.mxu0 0.0
        %447 = vmatprep.subr.mxu0 0.0
        %448 = vmatpush2.msra.mxu0 0.0
        %449 = vmatprep.subr.mxu0 0.0
        %450 = vmatpush2.msra.mxu0 0.0
        %451 = vmatprep.subr.mxu0 0.0
        %452 = vmatpush2.msra.mxu0 0.0
        %453 = vmatprep.subr.mxu0 0.0
        %454 = vmatpush2.msra.mxu0 0.0
        %455 = vmatprep.subr.mxu0 0.0
        %456 = vmatpush2.msra.mxu0 0.0
        %457 = vmatprep.subr.mxu0 0.0
        %458 = vmatpush2.msra.mxu0 0.0
        %459 = vmatprep.subr.mxu0 0.0
        %460 = vmatpush2.msra.mxu0 0.0
        %461 = vmatprep.subr.mxu0 0.0
        %462 = vmatpush2.msra.mxu0 0.0
        %463 = vmatprep.subr.mxu0 0.0
        %464 = vmatpush2.msra.mxu0 0.0
        %465 = vmatprep.subr.mxu0 0.0
        %466 = vmatpush2.msra.mxu0 0.0
        %467 = vmatprep.mubr.f32.mxu0 0.0
        %468 = vmatmul.mubr.f32.gmra.mxu0 %v398
        %v469 = vpop.f32.mrf.mxu0
        %v470 = vadd.f32 %v394, %v469
        %v471 = vpop.f32.mrf.mxu0
        %472 = vmatprep.mubr.f32.mxu0 0.0
        %473 = vmatmul.mubr.f32.gmra.mxu0 %v401
        %v474 = vpop.f32.mrf.mxu0
        %v475 = vadd.f32 %v394, %v474
        %v476 = vpop.f32.mrf.mxu0
        %477 = vdwg.mxu0
        %v478 = vld [vmem:[#allocation2] sm:$0x3]
        %vm479 = vcmask 261120
        %v481 = vsel %vm479, %v478, 0
        %483 = vmatprep.subr.mxu0 0.0
        %484 = vmatpush1.msra.mxu0 0.0
        %485 = vmatprep.subr.mxu0 0.0
        %486 = vmatpush1.msra.mxu0 0.0
        %487 = vmatprep.subr.mxu0 0.0
        %488 = vmatpush1.msra.mxu0 0.0
        %489 = vmatprep.subr.mxu0 0.0
        %490 = vmatpush1.msra.mxu0 0.0
        %491 = vmatprep.subr.mxu0 0.0
        %492 = vmatpush1.msra.mxu0 0.0
        %493 = vmatprep.subr.mxu0 0.0
        %494 = vmatpush1.msra.mxu0 0.0
        %495 = vmatprep.subr.mxu0 0.0
        %496 = vmatpush1.msra.mxu0 0.0
        %497 = vmatprep.subr.mxu0 0.0
        %498 = vmatpush1.msra.mxu0 0.0
        %499 = vmatprep.subr.mxu0 0.0
        %500 = vmatpush1.msra.mxu0 0.0
        %501 = vmatprep.subr.mxu0 0.0
        %502 = vmatpush1.msra.mxu0 0.0
        %503 = vmatprep.subr.mxu0 0.0
        %504 = vmatpush1.msra.mxu0 0.0
        %505 = vmatprep.subr.mxu0 0.0
        %506 = vmatpush1.msra.mxu0 0.0
        %507 = vmatprep.subr.mxu0 0.0
        %508 = vmatpush1.msra.mxu0 %v386
        %509 = vmatprep.subr.mxu0 0.0
        %510 = vmatpush1.msra.mxu0 %v385
        %511 = vmatprep.subr.mxu0 0.0
        %512 = vmatpush1.msra.mxu0 %v384
        %513 = vmatprep.subr.mxu0 0.0
        %514 = vmatpush1.msra.mxu0 %v383
        %515 = vmatprep.subr.mxu0 0.0
        %516 = vmatpush2.msra.mxu0 0.0
        %517 = vmatprep.subr.mxu0 0.0
        %518 = vmatpush2.msra.mxu0 0.0
        %519 = vmatprep.subr.mxu0 0.0
        %520 = vmatpush2.msra.mxu0 0.0
        %521 = vmatprep.subr.mxu0 0.0
        %522 = vmatpush2.msra.mxu0 0.0
        %523 = vmatprep.subr.mxu0 0.0
        %524 = vmatpush2.msra.mxu0 0.0
        %525 = vmatprep.subr.mxu0 0.0
        %526 = vmatpush2.msra.mxu0 0.0
        %527 = vmatprep.subr.mxu0 0.0
        %528 = vmatpush2.msra.mxu0 0.0
        %529 = vmatprep.subr.mxu0 0.0
        %530 = vmatpush2.msra.mxu0 0.0
        %531 = vmatprep.subr.mxu0 0.0
        %532 = vmatpush2.msra.mxu0 0.0
        %533 = vmatprep.subr.mxu0 0.0
        %534 = vmatpush2.msra.mxu0 0.0
        %535 = vmatprep.subr.mxu0 0.0
        %536 = vmatpush2.msra.mxu0 0.0
        %537 = vmatprep.subr.mxu0 0.0
        %538 = vmatpush2.msra.mxu0 0.0
        %539 = vmatprep.subr.mxu0 0.0
        %540 = vmatpush2.msra.mxu0 0.0
        %541 = vmatprep.subr.mxu0 0.0
        %542 = vmatpush2.msra.mxu0 0.0
        %543 = vmatprep.subr.mxu0 0.0
        %544 = vmatpush2.msra.mxu0 0.0
        %545 = vmatprep.subr.mxu0 0.0
        %546 = vmatpush2.msra.mxu0 0.0
        %547 = vmatprep.mubr.f32.mxu0 0.0
        %548 = vmatmul.mubr.f32.gmra.mxu0 %v481
        %v549 = vpop.f32.mrf.mxu0
        %v550 = vadd.f32 0.0, %v549
        %v551 = vpop.f32.mrf.mxu0
        %552 = vdwg.mxu0
        %v554 = vrot.slane %v550, 1
        %v557 = vadd.f32 %v470, %v550
        %v558 = vadd.f32 %v475, %v554
        %v559 = vtanh.pop %v557
        %v560 = vtanh.pop %v558
        %v563 = vrot.slane %v560, 7
        %vm564 = vcmask 1041409
        %v565 = vsel %vm564, %v563, %v559
        %v566 = vsel %vm479, %v565, 0
        %568 = vmatprep.subr.mxu0 0.0
        %569 = vmatpush1.msra.mxu0 0.0
        %570 = vmatprep.subr.mxu0 0.0
        %571 = vmatpush1.msra.mxu0 0.0
        %572 = vmatprep.subr.mxu0 0.0
        %573 = vmatpush1.msra.mxu0 0.0
        %574 = vmatprep.subr.mxu0 0.0
        %575 = vmatpush1.msra.mxu0 0.0
        %576 = vmatprep.subr.mxu0 0.0
        %577 = vmatpush1.msra.mxu0 0.0
        %578 = vmatprep.subr.mxu0 0.0
        %579 = vmatpush1.msra.mxu0 0.0
        %580 = vmatprep.subr.mxu0 0.0
        %581 = vmatpush1.msra.mxu0 0.0
        %582 = vmatprep.subr.mxu0 0.0
        %583 = vmatpush1.msra.mxu0 0.0
        %584 = vmatprep.subr.mxu0 0.0
        %585 = vmatpush1.msra.mxu0 0.0
        %586 = vmatprep.subr.mxu0 0.0
        %587 = vmatpush1.msra.mxu0 0.0
        %588 = vmatprep.subr.mxu0 0.0
        %589 = vmatpush1.msra.mxu0 0.0
        %590 = vmatprep.subr.mxu0 0.0
        %591 = vmatpush1.msra.mxu0 0.0
        %592 = vmatprep.subr.mxu0 0.0
        %593 = vmatpush1.msra.mxu0 %v386
        %594 = vmatprep.subr.mxu0 0.0
        %595 = vmatpush1.msra.mxu0 %v385
        %596 = vmatprep.subr.mxu0 0.0
        %597 = vmatpush1.msra.mxu0 %v384
        %598 = vmatprep.subr.mxu0 0.0
        %599 = vmatpush1.msra.mxu0 %v383
        %600 = vmatprep.subr.mxu0 0.0
        %601 = vmatpush2.msra.mxu0 0.0
        %602 = vmatprep.subr.mxu0 0.0
        %603 = vmatpush2.msra.mxu0 0.0
        %604 = vmatprep.subr.mxu0 0.0
        %605 = vmatpush2.msra.mxu0 0.0
        %606 = vmatprep.subr.mxu0 0.0
        %607 = vmatpush2.msra.mxu0 0.0
        %608 = vmatprep.subr.mxu0 0.0
        %609 = vmatpush2.msra.mxu0 0.0
        %610 = vmatprep.subr.mxu0 0.0
        %611 = vmatpush2.msra.mxu0 0.0
        %612 = vmatprep.subr.mxu0 0.0
        %613 = vmatpush2.msra.mxu0 0.0
        %614 = vmatprep.subr.mxu0 0.0
        %615 = vmatpush2.msra.mxu0 0.0
        %616 = vmatprep.subr.mxu0 0.0
        %617 = vmatpush2.msra.mxu0 0.0
        %618 = vmatprep.subr.mxu0 0.0
        %619 = vmatpush2.msra.mxu0 0.0
        %620 = vmatprep.subr.mxu0 0.0
        %621 = vmatpush2.msra.mxu0 0.0
        %622 = vmatprep.subr.mxu0 0.0
        %623 = vmatpush2.msra.mxu0 0.0
        %624 = vmatprep.subr.mxu0 0.0
        %625 = vmatpush2.msra.mxu0 0.0
        %626 = vmatprep.subr.mxu0 0.0
        %627 = vmatpush2.msra.mxu0 0.0
        %628 = vmatprep.subr.mxu0 0.0
        %629 = vmatpush2.msra.mxu0 0.0
        %630 = vmatprep.subr.mxu0 0.0
        %631 = vmatpush2.msra.mxu0 0.0
        %632 = vmatprep.mubr.f32.mxu0 0.0
        %633 = vmatmul.mubr.f32.gmra.mxu0 %v566
        %v634 = vpop.f32.mrf.mxu0
        %v635 = vadd.f32 0.0, %v634
        %v636 = vpop.f32.mrf.mxu0
        %637 = vdwg.mxu0
        %v639 = vrot.slane %v635, 7
        %v642 = vadd.f32 %v470, %v639
        %v643 = vadd.f32 %v475, %v635
        %v644 = vtanh.pop %v642
        %v645 = vtanh.pop %v643
        %v648 = vrot.slane %v644, 1
        %v649 = vsel %vm564, %v645, %v648
        %v650 = vsel %vm479, %v649, 0
        %652 = vmatprep.subr.mxu0 0.0
        %653 = vmatpush1.msra.mxu0 0.0
        %654 = vmatprep.subr.mxu0 0.0
        %655 = vmatpush1.msra.mxu0 0.0
        %656 = vmatprep.subr.mxu0 0.0
        %657 = vmatpush1.msra.mxu0 0.0
        %658 = vmatprep.subr.mxu0 0.0
        %659 = vmatpush1.msra.mxu0 0.0
        %660 = vmatprep.subr.mxu0 0.0
        %661 = vmatpush1.msra.mxu0 0.0
        %662 = vmatprep.subr.mxu0 0.0
        %663 = vmatpush1.msra.mxu0 0.0
        %664 = vmatprep.subr.mxu0 0.0
        %665 = vmatpush1.msra.mxu0 0.0
        %666 = vmatprep.subr.mxu0 0.0
        %667 = vmatpush1.msra.mxu0 0.0
        %668 = vmatprep.subr.mxu0 0.0
        %669 = vmatpush1.msra.mxu0 0.0
        %670 = vmatprep.subr.mxu0 0.0
        %671 = vmatpush1.msra.mxu0 0.0
        %672 = vmatprep.subr.mxu0 0.0
        %673 = vmatpush1.msra.mxu0 0.0
        %674 = vmatprep.subr.mxu0 0.0
        %675 = vmatpush1.msra.mxu0 0.0
        %676 = vmatprep.subr.mxu0 0.0
        %677 = vmatpush1.msra.mxu0 %v386
        %678 = vmatprep.subr.mxu0 0.0
        %679 = vmatpush1.msra.mxu0 %v385
        %680 = vmatprep.subr.mxu0 0.0
        %681 = vmatpush1.msra.mxu0 %v384
        %682 = vmatprep.subr.mxu0 0.0
        %683 = vmatpush1.msra.mxu0 %v383
        %684 = vmatprep.subr.mxu0 0.0
        %685 = vmatpush2.msra.mxu0 0.0
        %686 = vmatprep.subr.mxu0 0.0
        %687 = vmatpush2.msra.mxu0 0.0
        %688 = vmatprep.subr.mxu0 0.0
        %689 = vmatpush2.msra.mxu0 0.0
        %690 = vmatprep.subr.mxu0 0.0
        %691 = vmatpush2.msra.mxu0 0.0
        %692 = vmatprep.subr.mxu0 0.0
        %693 = vmatpush2.msra.mxu0 0.0
        %694 = vmatprep.subr.mxu0 0.0
        %695 = vmatpush2.msra.mxu0 0.0
        %696 = vmatprep.subr.mxu0 0.0
        %697 = vmatpush2.msra.mxu0 0.0
        %698 = vmatprep.subr.mxu0 0.0
        %699 = vmatpush2.msra.mxu0 0.0
        %700 = vmatprep.subr.mxu0 0.0
        %701 = vmatpush2.msra.mxu0 0.0
        %702 = vmatprep.subr.mxu0 0.0
        %703 = vmatpush2.msra.mxu0 0.0
        %704 = vmatprep.subr.mxu0 0.0
        %705 = vmatpush2.msra.mxu0 0.0
        %706 = vmatprep.subr.mxu0 0.0
        %707 = vmatpush2.msra.mxu0 0.0
        %708 = vmatprep.subr.mxu0 0.0
        %709 = vmatpush2.msra.mxu0 0.0
        %710 = vmatprep.subr.mxu0 0.0
        %711 = vmatpush2.msra.mxu0 0.0
        %712 = vmatprep.subr.mxu0 0.0
        %713 = vmatpush2.msra.mxu0 0.0
        %714 = vmatprep.subr.mxu0 0.0
        %715 = vmatpush2.msra.mxu0 0.0
        %716 = vmatprep.mubr.f32.mxu0 0.0
        %717 = vmatmul.mubr.f32.gmra.mxu0 %v650
        %v718 = vpop.f32.mrf.mxu0
        %v719 = vadd.f32 0.0, %v718
        %v720 = vpop.f32.mrf.mxu0
        %721 = vdwg.mxu0
        %v723 = vrot.slane %v719, 6
        %v724 = vrot.slane %v719, 7
        %v727 = vadd.f32 %v470, %v723
        %v728 = vadd.f32 %v475, %v724
        %v729 = vtanh.pop %v727
        %v730 = vtanh.pop %v728
        %v733 = vrot.slane %v729, 2
        %v734 = vrot.slane %v730, 1
        %v735 = vsel %vm564, %v734, %v733
        %v736 = vsel %vm479, %v735, 0
        %738 = vmatprep.subr.mxu0 0.0
        %739 = vmatpush1.msra.mxu0 0.0
        %740 = vmatprep.subr.mxu0 0.0
        %741 = vmatpush1.msra.mxu0 0.0
        %742 = vmatprep.subr.mxu0 0.0
        %743 = vmatpush1.msra.mxu0 0.0
        %744 = vmatprep.subr.mxu0 0.0
        %745 = vmatpush1.msra.mxu0 0.0
        %746 = vmatprep.subr.mxu0 0.0
        %747 = vmatpush1.msra.mxu0 0.0
        %748 = vmatprep.subr.mxu0 0.0
        %749 = vmatpush1.msra.mxu0 0.0
        %750 = vmatprep.subr.mxu0 0.0
        %751 = vmatpush1.msra.mxu0 0.0
        %752 = vmatprep.subr.mxu0 0.0
        %753 = vmatpush1.msra.mxu0 0.0
        %754 = vmatprep.subr.mxu0 0.0
        %755 = vmatpush1.msra.mxu0 0.0
        %756 = vmatprep.subr.mxu0 0.0
        %757 = vmatpush1.msra.mxu0 0.0
        %758 = vmatprep.subr.mxu0 0.0
        %759 = vmatpush1.msra.mxu0 0.0
        %760 = vmatprep.subr.mxu0 0.0
        %761 = vmatpush1.msra.mxu0 0.0
        %762 = vmatprep.subr.mxu0 0.0
        %763 = vmatpush1.msra.mxu0 %v386
        %764 = vmatprep.subr.mxu0 0.0
        %765 = vmatpush1.msra.mxu0 %v385
        %766 = vmatprep.subr.mxu0 0.0
        %767 = vmatpush1.msra.mxu0 %v384
        %768 = vmatprep.subr.mxu0 0.0
        %769 = vmatpush1.msra.mxu0 %v383
        %770 = vmatprep.subr.mxu0 0.0
        %771 = vmatpush2.msra.mxu0 0.0
        %772 = vmatprep.subr.mxu0 0.0
        %773 = vmatpush2.msra.mxu0 0.0
        %774 = vmatprep.subr.mxu0 0.0
        %775 = vmatpush2.msra.mxu0 0.0
        %776 = vmatprep.subr.mxu0 0.0
        %777 = vmatpush2.msra.mxu0 0.0
        %778 = vmatprep.subr.mxu0 0.0
        %779 = vmatpush2.msra.mxu0 0.0
        %780 = vmatprep.subr.mxu0 0.0
        %781 = vmatpush2.msra.mxu0 0.0
        %782 = vmatprep.subr.mxu0 0.0
        %783 = vmatpush2.msra.mxu0 0.0
        %784 = vmatprep.subr.mxu0 0.0
        %785 = vmatpush2.msra.mxu0 0.0
        %786 = vmatprep.subr.mxu0 0.0
        %787 = vmatpush2.msra.mxu0 0.0
        %788 = vmatprep.subr.mxu0 0.0
        %789 = vmatpush2.msra.mxu0 0.0
        %790 = vmatprep.subr.mxu0 0.0
        %791 = vmatpush2.msra.mxu0 0.0
        %792 = vmatprep.subr.mxu0 0.0
        %793 = vmatpush2.msra.mxu0 0.0
        %794 = vmatprep.subr.mxu0 0.0
        %795 = vmatpush2.msra.mxu0 0.0
        %796 = vmatprep.subr.mxu0 0.0
        %797 = vmatpush2.msra.mxu0 0.0
        %798 = vmatprep.subr.mxu0 0.0
        %799 = vmatpush2.msra.mxu0 0.0
        %800 = vmatprep.subr.mxu0 0.0
        %801 = vmatpush2.msra.mxu0 0.0
        %802 = vmatprep.mubr.f32.mxu0 0.0
        %803 = vmatmul.mubr.f32.gmra.mxu0 %v736
        %v804 = vpop.f32.mrf.mxu0
        %v805 = vadd.f32 0.0, %v804
        %v806 = vpop.f32.mrf.mxu0
        %807 = vdwg.mxu0
        %v809 = vrot.slane %v805, 5
        %v810 = vrot.slane %v805, 6
        %v813 = vadd.f32 %v470, %v809
        %v814 = vadd.f32 %v475, %v810
        %v815 = vtanh.pop %v813
        %v816 = vtanh.pop %v814
        %v819 = vrot.slane %v815, 3
        %v820 = vrot.slane %v816, 2
        %v821 = vsel %vm564, %v820, %v819
        %v822 = vsel %vm479, %v821, 0
        %824 = vmatprep.subr.mxu0 0.0
        %825 = vmatpush1.msra.mxu0 0.0
        %826 = vmatprep.subr.mxu0 0.0
        %827 = vmatpush1.msra.mxu0 0.0
        %828 = vmatprep.subr.mxu0 0.0
        %829 = vmatpush1.msra.mxu0 0.0
        %830 = vmatprep.subr.mxu0 0.0
        %831 = vmatpush1.msra.mxu0 0.0
        %832 = vmatprep.subr.mxu0 0.0
        %833 = vmatpush1.msra.mxu0 0.0
        %834 = vmatprep.subr.mxu0 0.0
        %835 = vmatpush1.msra.mxu0 0.0
        %836 = vmatprep.subr.mxu0 0.0
        %837 = vmatpush1.msra.mxu0 0.0
        %838 = vmatprep.subr.mxu0 0.0
        %839 = vmatpush1.msra.mxu0 0.0
        %840 = vmatprep.subr.mxu0 0.0
        %841 = vmatpush1.msra.mxu0 0.0
        %842 = vmatprep.subr.mxu0 0.0
        %843 = vmatpush1.msra.mxu0 0.0
        %844 = vmatprep.subr.mxu0 0.0
        %845 = vmatpush1.msra.mxu0 0.0
        %846 = vmatprep.subr.mxu0 0.0
        %847 = vmatpush1.msra.mxu0 0.0
        %848 = vmatprep.subr.mxu0 0.0
        %849 = vmatpush1.msra.mxu0 %v386
        %850 = vmatprep.subr.mxu0 0.0
        %851 = vmatpush1.msra.mxu0 %v385
        %852 = vmatprep.subr.mxu0 0.0
        %853 = vmatpush1.msra.mxu0 %v384
        %854 = vmatprep.subr.mxu0 0.0
        %855 = vmatpush1.msra.mxu0 %v383
        %856 = vmatprep.subr.mxu0 0.0
        %857 = vmatpush2.msra.mxu0 0.0
        %858 = vmatprep.subr.mxu0 0.0
        %859 = vmatpush2.msra.mxu0 0.0
        %860 = vmatprep.subr.mxu0 0.0
        %861 = vmatpush2.msra.mxu0 0.0
        %862 = vmatprep.subr.mxu0 0.0
        %863 = vmatpush2.msra.mxu0 0.0
        %864 = vmatprep.subr.mxu0 0.0
        %865 = vmatpush2.msra.mxu0 0.0
        %866 = vmatprep.subr.mxu0 0.0
        %867 = vmatpush2.msra.mxu0 0.0
        %868 = vmatprep.subr.mxu0 0.0
        %869 = vmatpush2.msra.mxu0 0.0
        %870 = vmatprep.subr.mxu0 0.0
        %871 = vmatpush2.msra.mxu0 0.0
        %872 = vmatprep.subr.mxu0 0.0
        %873 = vmatpush2.msra.mxu0 0.0
        %874 = vmatprep.subr.mxu0 0.0
        %875 = vmatpush2.msra.mxu0 0.0
        %876 = vmatprep.subr.mxu0 0.0
        %877 = vmatpush2.msra.mxu0 0.0
        %878 = vmatprep.subr.mxu0 0.0
        %879 = vmatpush2.msra.mxu0 0.0
        %880 = vmatprep.subr.mxu0 0.0
        %881 = vmatpush2.msra.mxu0 0.0
        %882 = vmatprep.subr.mxu0 0.0
        %883 = vmatpush2.msra.mxu0 0.0
        %884 = vmatprep.subr.mxu0 0.0
        %885 = vmatpush2.msra.mxu0 0.0
        %886 = vmatprep.subr.mxu0 0.0
        %887 = vmatpush2.msra.mxu0 0.0
        %888 = vmatprep.mubr.f32.mxu0 0.0
        %889 = vmatmul.mubr.f32.gmra.mxu0 %v822
        %v890 = vpop.f32.mrf.mxu0
        %v891 = vadd.f32 0.0, %v890
        %v892 = vpop.f32.mrf.mxu0
        %893 = vdwg.mxu0
        %v895 = vrot.slane %v891, 4
        %v896 = vrot.slane %v891, 5
        %v899 = vadd.f32 %v470, %v895
        %v900 = vadd.f32 %v475, %v896
        %v901 = vtanh.pop %v899
        %v902 = vtanh.pop %v900
        %v905 = vrot.slane %v901, 4
        %v906 = vrot.slane %v902, 3
        %v907 = vsel %vm564, %v906, %v905
        %v908 = vsel %vm479, %v907, 0
        %910 = vmatprep.subr.mxu0 0.0
        %911 = vmatpush1.msra.mxu0 0.0
        %912 = vmatprep.subr.mxu0 0.0
        %913 = vmatpush1.msra.mxu0 0.0
        %914 = vmatprep.subr.mxu0 0.0
        %915 = vmatpush1.msra.mxu0 0.0
        %916 = vmatprep.subr.mxu0 0.0
        %917 = vmatpush1.msra.mxu0 0.0
        %918 = vmatprep.subr.mxu0 0.0
        %919 = vmatpush1.msra.mxu0 0.0
        %920 = vmatprep.subr.mxu0 0.0
        %921 = vmatpush1.msra.mxu0 0.0
        %922 = vmatprep.subr.mxu0 0.0
        %923 = vmatpush1.msra.mxu0 0.0
        %924 = vmatprep.subr.mxu0 0.0
        %925 = vmatpush1.msra.mxu0 0.0
        %926 = vmatprep.subr.mxu0 0.0
        %927 = vmatpush1.msra.mxu0 0.0
        %928 = vmatprep.subr.mxu0 0.0
        %929 = vmatpush1.msra.mxu0 0.0
        %930 = vmatprep.subr.mxu0 0.0
        %931 = vmatpush1.msra.mxu0 0.0
        %932 = vmatprep.subr.mxu0 0.0
        %933 = vmatpush1.msra.mxu0 0.0
        %934 = vmatprep.subr.mxu0 0.0
        %935 = vmatpush1.msra.mxu0 %v386
        %936 = vmatprep.subr.mxu0 0.0
        %937 = vmatpush1.msra.mxu0 %v385
        %938 = vmatprep.subr.mxu0 0.0
        %939 = vmatpush1.msra.mxu0 %v384
        %940 = vmatprep.subr.mxu0 0.0
        %941 = vmatpush1.msra.mxu0 %v383
        %942 = vmatprep.subr.mxu0 0.0
        %943 = vmatpush2.msra.mxu0 0.0
        %944 = vmatprep.subr.mxu0 0.0
        %945 = vmatpush2.msra.mxu0 0.0
        %946 = vmatprep.subr.mxu0 0.0
        %947 = vmatpush2.msra.mxu0 0.0
        %948 = vmatprep.subr.mxu0 0.0
        %949 = vmatpush2.msra.mxu0 0.0
        %950 = vmatprep.subr.mxu0 0.0
        %951 = vmatpush2.msra.mxu0 0.0
        %952 = vmatprep.subr.mxu0 0.0
        %953 = vmatpush2.msra.mxu0 0.0
        %954 = vmatprep.subr.mxu0 0.0
        %955 = vmatpush2.msra.mxu0 0.0
        %956 = vmatprep.subr.mxu0 0.0
        %957 = vmatpush2.msra.mxu0 0.0
        %958 = vmatprep.subr.mxu0 0.0
        %959 = vmatpush2.msra.mxu0 0.0
        %960 = vmatprep.subr.mxu0 0.0
        %961 = vmatpush2.msra.mxu0 0.0
        %962 = vmatprep.subr.mxu0 0.0
        %963 = vmatpush2.msra.mxu0 0.0
        %964 = vmatprep.subr.mxu0 0.0
        %965 = vmatpush2.msra.mxu0 0.0
        %966 = vmatprep.subr.mxu0 0.0
        %967 = vmatpush2.msra.mxu0 0.0
        %968 = vmatprep.subr.mxu0 0.0
        %969 = vmatpush2.msra.mxu0 0.0
        %970 = vmatprep.subr.mxu0 0.0
        %971 = vmatpush2.msra.mxu0 0.0
        %972 = vmatprep.subr.mxu0 0.0
        %973 = vmatpush2.msra.mxu0 0.0
        %974 = vmatprep.mubr.f32.mxu0 0.0
        %975 = vmatmul.mubr.f32.gmra.mxu0 %v908
        %v976 = vpop.f32.mrf.mxu0
        %v977 = vadd.f32 0.0, %v976
        %v978 = vpop.f32.mrf.mxu0
        %979 = vdwg.mxu0
        %v981 = vrot.slane %v977, 3
        %v982 = vrot.slane %v977, 4
        %v985 = vadd.f32 %v470, %v981
        %v986 = vadd.f32 %v475, %v982
        %v987 = vtanh.pop %v985
        %v988 = vtanh.pop %v986
        %v991 = vrot.slane %v987, 5
        %v992 = vrot.slane %v988, 4
        %v993 = vsel %vm564, %v992, %v991
        %v994 = vsel %vm479, %v993, 0
        %996 = vmatprep.subr.mxu0 0.0
        %997 = vmatpush1.msra.mxu0 0.0
        %998 = vmatprep.subr.mxu0 0.0
        %999 = vmatpush1.msra.mxu0 0.0
        %1000 = vmatprep.subr.mxu0 0.0
        %1001 = vmatpush1.msra.mxu0 0.0
        %1002 = vmatprep.subr.mxu0 0.0
        %1003 = vmatpush1.msra.mxu0 0.0
        %1004 = vmatprep.subr.mxu0 0.0
        %1005 = vmatpush1.msra.mxu0 0.0
        %1006 = vmatprep.subr.mxu0 0.0
        %1007 = vmatpush1.msra.mxu0 0.0
        %1008 = vmatprep.subr.mxu0 0.0
        %1009 = vmatpush1.msra.mxu0 0.0
        %1010 = vmatprep.subr.mxu0 0.0
        %1011 = vmatpush1.msra.mxu0 0.0
        %1012 = vmatprep.subr.mxu0 0.0
        %1013 = vmatpush1.msra.mxu0 0.0
        %1014 = vmatprep.subr.mxu0 0.0
        %1015 = vmatpush1.msra.mxu0 0.0
        %1016 = vmatprep.subr.mxu0 0.0
        %1017 = vmatpush1.msra.mxu0 0.0
        %1018 = vmatprep.subr.mxu0 0.0
        %1019 = vmatpush1.msra.mxu0 0.0
        %1020 = vmatprep.subr.mxu0 0.0
        %1021 = vmatpush1.msra.mxu0 %v386
        %1022 = vmatprep.subr.mxu0 0.0
        %1023 = vmatpush1.msra.mxu0 %v385
        %1024 = vmatprep.subr.mxu0 0.0
        %1025 = vmatpush1.msra.mxu0 %v384
        %1026 = vmatprep.subr.mxu0 0.0
        %1027 = vmatpush1.msra.mxu0 %v383
        %1028 = vmatprep.subr.mxu0 0.0
        %1029 = vmatpush2.msra.mxu0 0.0
        %1030 = vmatprep.subr.mxu0 0.0
        %1031 = vmatpush2.msra.mxu0 0.0
        %1032 = vmatprep.subr.mxu0 0.0
        %1033 = vmatpush2.msra.mxu0 0.0
        %1034 = vmatprep.subr.mxu0 0.0
        %1035 = vmatpush2.msra.mxu0 0.0
        %1036 = vmatprep.subr.mxu0 0.0
        %1037 = vmatpush2.msra.mxu0 0.0
        %1038 = vmatprep.subr.mxu0 0.0
        %1039 = vmatpush2.msra.mxu0 0.0
        %1040 = vmatprep.subr.mxu0 0.0
        %1041 = vmatpush2.msra.mxu0 0.0
        %1042 = vmatprep.subr.mxu0 0.0
        %1043 = vmatpush2.msra.mxu0 0.0
        %1044 = vmatprep.subr.mxu0 0.0
        %1045 = vmatpush2.msra.mxu0 0.0
        %1046 = vmatprep.subr.mxu0 0.0
        %1047 = vmatpush2.msra.mxu0 0.0
        %1048 = vmatprep.subr.mxu0 0.0
        %1049 = vmatpush2.msra.mxu0 0.0
        %1050 = vmatprep.subr.mxu0 0.0
        %1051 = vmatpush2.msra.mxu0 0.0
        %1052 = vmatprep.subr.mxu0 0.0
        %1053 = vmatpush2.msra.mxu0 0.0
        %1054 = vmatprep.subr.mxu0 0.0
        %1055 = vmatpush2.msra.mxu0 0.0
        %1056 = vmatprep.subr.mxu0 0.0
        %1057 = vmatpush2.msra.mxu0 0.0
        %1058 = vmatprep.subr.mxu0 0.0
        %1059 = vmatpush2.msra.mxu0 0.0
        %1060 = vmatprep.mubr.f32.mxu0 0.0
        %1061 = vmatmul.mubr.f32.gmra.mxu0 %v994
        %v1062 = vpop.f32.mrf.mxu0
        %v1063 = vadd.f32 0.0, %v1062
        %v1064 = vpop.f32.mrf.mxu0
        %1065 = vdwg.mxu0
        %v1067 = vrot.slane %v1063, 2
        %v1068 = vrot.slane %v1063, 3
        %v1071 = vadd.f32 %v470, %v1067
        %v1072 = vadd.f32 %v475, %v1068
        %v1073 = vtanh.pop %v1071
        %v1074 = vtanh.pop %v1072
        %v1077 = vrot.slane %v1073, 6
        %v1078 = vrot.slane %v1074, 5
        %v1079 = vsel %vm564, %v1078, %v1077
        %v1080 = vsel %vm479, %v1079, 0
        %1082 = vmatprep.subr.mxu0 0.0
        %1083 = vmatpush1.msra.mxu0 0.0
        %1084 = vmatprep.subr.mxu0 0.0
        %1085 = vmatpush1.msra.mxu0 0.0
        %1086 = vmatprep.subr.mxu0 0.0
        %1087 = vmatpush1.msra.mxu0 0.0
        %1088 = vmatprep.subr.mxu0 0.0
        %1089 = vmatpush1.msra.mxu0 0.0
        %1090 = vmatprep.subr.mxu0 0.0
        %1091 = vmatpush1.msra.mxu0 0.0
        %1092 = vmatprep.subr.mxu0 0.0
        %1093 = vmatpush1.msra.mxu0 0.0
        %1094 = vmatprep.subr.mxu0 0.0
        %1095 = vmatpush1.msra.mxu0 0.0
        %1096 = vmatprep.subr.mxu0 0.0
        %1097 = vmatpush1.msra.mxu0 0.0
        %1098 = vmatprep.subr.mxu0 0.0
        %1099 = vmatpush1.msra.mxu0 0.0
        %1100 = vmatprep.subr.mxu0 0.0
        %1101 = vmatpush1.msra.mxu0 0.0
        %1102 = vmatprep.subr.mxu0 0.0
        %1103 = vmatpush1.msra.mxu0 0.0
        %1104 = vmatprep.subr.mxu0 0.0
        %1105 = vmatpush1.msra.mxu0 0.0
        %1106 = vmatprep.subr.mxu0 0.0
        %1107 = vmatpush1.msra.mxu0 %v386
        %1108 = vmatprep.subr.mxu0 0.0
        %1109 = vmatpush1.msra.mxu0 %v385
        %1110 = vmatprep.subr.mxu0 0.0
        %1111 = vmatpush1.msra.mxu0 %v384
        %1112 = vmatprep.subr.mxu0 0.0
        %1113 = vmatpush1.msra.mxu0 %v383
        %1114 = vmatprep.subr.mxu0 0.0
        %1115 = vmatpush2.msra.mxu0 0.0
        %1116 = vmatprep.subr.mxu0 0.0
        %1117 = vmatpush2.msra.mxu0 0.0
        %1118 = vmatprep.subr.mxu0 0.0
        %1119 = vmatpush2.msra.mxu0 0.0
        %1120 = vmatprep.subr.mxu0 0.0
        %1121 = vmatpush2.msra.mxu0 0.0
        %1122 = vmatprep.subr.mxu0 0.0
        %1123 = vmatpush2.msra.mxu0 0.0
        %1124 = vmatprep.subr.mxu0 0.0
        %1125 = vmatpush2.msra.mxu0 0.0
        %1126 = vmatprep.subr.mxu0 0.0
        %1127 = vmatpush2.msra.mxu0 0.0
        %1128 = vmatprep.subr.mxu0 0.0
        %1129 = vmatpush2.msra.mxu0 0.0
        %1130 = vmatprep.subr.mxu0 0.0
        %1131 = vmatpush2.msra.mxu0 0.0
        %1132 = vmatprep.subr.mxu0 0.0
        %1133 = vmatpush2.msra.mxu0 0.0
        %1134 = vmatprep.subr.mxu0 0.0
        %1135 = vmatpush2.msra.mxu0 0.0
        %1136 = vmatprep.subr.mxu0 0.0
        %1137 = vmatpush2.msra.mxu0 0.0
        %1138 = vmatprep.subr.mxu0 0.0
        %1139 = vmatpush2.msra.mxu0 0.0
        %1140 = vmatprep.subr.mxu0 0.0
        %1141 = vmatpush2.msra.mxu0 0.0
        %1142 = vmatprep.subr.mxu0 0.0
        %1143 = vmatpush2.msra.mxu0 0.0
        %1144 = vmatprep.subr.mxu0 0.0
        %1145 = vmatpush2.msra.mxu0 0.0
        %1146 = vmatprep.mubr.f32.mxu0 0.0
        %1147 = vmatmul.mubr.f32.gmra.mxu0 %v1080
        %v1148 = vpop.f32.mrf.mxu0
        %v1149 = vadd.f32 0.0, %v1148
        %v1150 = vpop.f32.mrf.mxu0
        %1151 = vdwg.mxu0
        %v1153 = vrot.slane %v1149, 1
        %v1154 = vrot.slane %v1149, 2
        %v1157 = vadd.f32 %v470, %v1153
        %v1158 = vadd.f32 %v475, %v1154
        %v1159 = vtanh.pop %v1157
        %v1160 = vtanh.pop %v1158
        %v1163 = vrot.slane %v1160, 7
        %vm1166 = vcmask 261127
        %1167 = vst.msk [vmem:[#allocation2 - $0x7] sm:$0x80] %vm1166, %v1159
        %vm1168 = vcmask 253952
        %1169 = vst.msk [vmem:[#allocation2 + $0x1] sm:$0x1] %vm1168, %v1163
        %p1170 = scmp.eq.s32.totalorder %s22, 1
        // Predicated region
        $region107: #{vanilla_rnn_classifier.1} parent=85 // pred_check
          %p1171 = pneg %p1170
        $region108: #{vanilla_rnn_classifier.1} parent=85 // pred_check_branch
          %1173 = sbr.rel (%p1171) target = $region110
        $region109: #{vanilla_rnn_classifier.1} parent=85 // pred_region
          %v1174 = vld [vmem:[#allocation9] sm:$0xff]
          %v1175 = vld [vmem:[#allocation9 + $0x8] sm:$0xff]
          %v1176 = vld [vmem:[#allocation9 + $0x10] sm:$0xff]
          %v1177 = vld [vmem:[#allocation9 + $0x18] sm:$0xff]
          %v1178 = vld [vmem:[%s5] sm:$0x1]
          %v1180 = vlaneseq
          %v1181 = vshrl.u32 %v1180, 7
          %v1182 = vsub.s32 0, %v1181
          %v1183 = vrot.slane %v1178, %v1182
          %v1185 = vrot.slane %v1159, 7
          %v1186 = vrot.slane %v1160, 6
          %v1187 = vsel %vm564, %v1186, %v1185
          %v1188 = vsel %vm479, %v1187, 0
          %1190 = vmatprep.subr.mxu0 0.0
          %1191 = vmatpush1.msra.mxu0 0.0
          %1192 = vmatprep.subr.mxu0 0.0
          %1193 = vmatpush1.msra.mxu0 0.0
          %1194 = vmatprep.subr.mxu0 0.0
          %1195 = vmatpush1.msra.mxu0 0.0
          %1196 = vmatprep.subr.mxu0 0.0
          %1197 = vmatpush1.msra.mxu0 0.0
          %1198 = vmatprep.subr.mxu0 0.0
          %1199 = vmatpush1.msra.mxu0 0.0
          %1200 = vmatprep.subr.mxu0 0.0
          %1201 = vmatpush1.msra.mxu0 0.0
          %1202 = vmatprep.subr.mxu0 0.0
          %1203 = vmatpush1.msra.mxu0 0.0
          %1204 = vmatprep.subr.mxu0 0.0
          %1205 = vmatpush1.msra.mxu0 0.0
          %1206 = vmatprep.subr.mxu0 0.0
          %1207 = vmatpush1.msra.mxu0 0.0
          %1208 = vmatprep.subr.mxu0 0.0
          %1209 = vmatpush1.msra.mxu0 0.0
          %1210 = vmatprep.subr.mxu0 0.0
          %1211 = vmatpush1.msra.mxu0 0.0
          %1212 = vmatprep.subr.mxu0 0.0
          %1213 = vmatpush1.msra.mxu0 0.0
          %1214 = vmatprep.subr.mxu0 0.0
          %1215 = vmatpush1.msra.mxu0 %v1177
          %1216 = vmatprep.subr.mxu0 0.0
          %1217 = vmatpush1.msra.mxu0 %v1176
          %1218 = vmatprep.subr.mxu0 0.0
          %1219 = vmatpush1.msra.mxu0 %v1175
          %1220 = vmatprep.subr.mxu0 0.0
          %1221 = vmatpush1.msra.mxu0 %v1174
          %1222 = vmatprep.subr.mxu0 0.0
          %1223 = vmatpush2.msra.mxu0 0.0
          %1224 = vmatprep.subr.mxu0 0.0
          %1225 = vmatpush2.msra.mxu0 0.0
          %1226 = vmatprep.subr.mxu0 0.0
          %1227 = vmatpush2.msra.mxu0 0.0
          %1228 = vmatprep.subr.mxu0 0.0
          %1229 = vmatpush2.msra.mxu0 0.0
          %1230 = vmatprep.subr.mxu0 0.0
          %1231 = vmatpush2.msra.mxu0 0.0
          %1232 = vmatprep.subr.mxu0 0.0
          %1233 = vmatpush2.msra.mxu0 0.0
          %1234 = vmatprep.subr.mxu0 0.0
          %1235 = vmatpush2.msra.mxu0 0.0
          %1236 = vmatprep.subr.mxu0 0.0
          %1237 = vmatpush2.msra.mxu0 0.0
          %1238 = vmatprep.subr.mxu0 0.0
          %1239 = vmatpush2.msra.mxu0 0.0
          %1240 = vmatprep.subr.mxu0 0.0
          %1241 = vmatpush2.msra.mxu0 0.0
          %1242 = vmatprep.subr.mxu0 0.0
          %1243 = vmatpush2.msra.mxu0 0.0
          %1244 = vmatprep.subr.mxu0 0.0
          %1245 = vmatpush2.msra.mxu0 0.0
          %1246 = vmatprep.subr.mxu0 0.0
          %1247 = vmatpush2.msra.mxu0 0.0
          %1248 = vmatprep.subr.mxu0 0.0
          %1249 = vmatpush2.msra.mxu0 0.0
          %1250 = vmatprep.subr.mxu0 0.0
          %1251 = vmatpush2.msra.mxu0 0.0
          %1252 = vmatprep.subr.mxu0 0.0
          %1253 = vmatpush2.msra.mxu0 0.0
          %1254 = vmatprep.mubr.f32.mxu0 0.0
          %1255 = vmatmul.mubr.f32.gmra.mxu0 %v1188
          %v1256 = vpop.f32.mrf.mxu0
          %v1257 = vadd.f32 %v1183, %v1256
          %v1258 = vpop.f32.mrf.mxu0
          %1259 = vdwg.mxu0
          %v1260 = vld [vmem:[%s6] sm:$0xff]
          %v1261 = vld [vmem:[%s6 + $0x8] sm:$0xff]
          %v1262 = vld [vmem:[%s6 + $0x10] sm:$0xff]
          %v1263 = vld [vmem:[%s6 + $0x18] sm:$0xff]
          %v1264 = vld [vmem:[%s7] sm:$0x1]
          %v1266 = vlaneseq
          %v1267 = vshrl.u32 %v1266, 7
          %v1268 = vsub.s32 0, %v1267
          %v1269 = vrot.slane %v1264, %v1268
          %v1272 = vsel %vm479, %v1257, 0
          %1274 = vmatprep.subr.mxu0 0.0
          %1275 = vmatpush1.msra.mxu0 0.0
          %1276 = vmatprep.subr.mxu0 0.0
          %1277 = vmatpush1.msra.mxu0 0.0
          %1278 = vmatprep.subr.mxu0 0.0
          %1279 = vmatpush1.msra.mxu0 0.0
          %1280 = vmatprep.subr.mxu0 0.0
          %1281 = vmatpush1.msra.mxu0 0.0
          %1282 = vmatprep.subr.mxu0 0.0
          %1283 = vmatpush1.msra.mxu0 0.0
          %1284 = vmatprep.subr.mxu0 0.0
          %1285 = vmatpush1.msra.mxu0 0.0
          %1286 = vmatprep.subr.mxu0 0.0
          %1287 = vmatpush1.msra.mxu0 0.0
          %1288 = vmatprep.subr.mxu0 0.0
          %1289 = vmatpush1.msra.mxu0 0.0
          %1290 = vmatprep.subr.mxu0 0.0
          %1291 = vmatpush1.msra.mxu0 0.0
          %1292 = vmatprep.subr.mxu0 0.0
          %1293 = vmatpush1.msra.mxu0 0.0
          %1294 = vmatprep.subr.mxu0 0.0
          %1295 = vmatpush1.msra.mxu0 0.0
          %1296 = vmatprep.subr.mxu0 0.0
          %1297 = vmatpush1.msra.mxu0 0.0
          %1298 = vmatprep.subr.mxu0 0.0
          %1299 = vmatpush1.msra.mxu0 %v1263
          %1300 = vmatprep.subr.mxu0 0.0
          %1301 = vmatpush1.msra.mxu0 %v1262
          %1302 = vmatprep.subr.mxu0 0.0
          %1303 = vmatpush1.msra.mxu0 %v1261
          %1304 = vmatprep.subr.mxu0 0.0
          %1305 = vmatpush1.msra.mxu0 %v1260
          %1306 = vmatprep.subr.mxu0 0.0
          %1307 = vmatpush2.msra.mxu0 0.0
          %1308 = vmatprep.subr.mxu0 0.0
          %1309 = vmatpush2.msra.mxu0 0.0
          %1310 = vmatprep.subr.mxu0 0.0
          %1311 = vmatpush2.msra.mxu0 0.0
          %1312 = vmatprep.subr.mxu0 0.0
          %1313 = vmatpush2.msra.mxu0 0.0
          %1314 = vmatprep.subr.mxu0 0.0
          %1315 = vmatpush2.msra.mxu0 0.0
          %1316 = vmatprep.subr.mxu0 0.0
          %1317 = vmatpush2.msra.mxu0 0.0
          %1318 = vmatprep.subr.mxu0 0.0
          %1319 = vmatpush2.msra.mxu0 0.0
          %1320 = vmatprep.subr.mxu0 0.0
          %1321 = vmatpush2.msra.mxu0 0.0
          %1322 = vmatprep.subr.mxu0 0.0
          %1323 = vmatpush2.msra.mxu0 0.0
          %1324 = vmatprep.subr.mxu0 0.0
          %1325 = vmatpush2.msra.mxu0 0.0
          %1326 = vmatprep.subr.mxu0 0.0
          %1327 = vmatpush2.msra.mxu0 0.0
          %1328 = vmatprep.subr.mxu0 0.0
          %1329 = vmatpush2.msra.mxu0 0.0
          %1330 = vmatprep.subr.mxu0 0.0
          %1331 = vmatpush2.msra.mxu0 0.0
          %1332 = vmatprep.subr.mxu0 0.0
          %1333 = vmatpush2.msra.mxu0 0.0
          %1334 = vmatprep.subr.mxu0 0.0
          %1335 = vmatpush2.msra.mxu0 0.0
          %1336 = vmatprep.subr.mxu0 0.0
          %1337 = vmatpush2.msra.mxu0 0.0
          %1338 = vmatprep.mubr.f32.mxu0 0.0
          %1339 = vmatmul.mubr.f32.gmra.mxu0 %v1272
          %v1340 = vpop.f32.mrf.mxu0
          %v1341 = vadd.f32 %v1269, %v1340
          %v1342 = vpop.f32.mrf.mxu0
          %1343 = vdwg.mxu0
          %vm1344 = vcmask 25600
          %1345 = vst.msk [vmem:[#allocation10] sm:$0x3] %vm1344, %v1341
        $region110: #{vanilla_rnn_classifier.1} parent=85 // pred_fallthru
          _
        // Predicated region
        $region111: #{vanilla_rnn_classifier.1} parent=85 // pred_check
          %p1346 = pneg %p208
        $region112: #{vanilla_rnn_classifier.1} parent=85 // pred_check_branch
          %1348 = sbr.rel (%p1346) target = $region114
        $region113: #{vanilla_rnn_classifier.1} parent=85 // pred_region
          %s1350 = ssub.s32 32, 32
          %1351 = vsyncadd [#allocation6], %s1350
          %s1353 = sshll.u32 [#allocation10], 4
          %s1354 = int_to_ptr.vmem [resolvable:$true] %s1353
          %1356 = dma.vmem_to_hbm [thread:$0]  %s1354, 32, %s8, [#allocation6]
        $region114: #{vanilla_rnn_classifier.1} parent=85 // pred_fallthru
          _
        // Predicated region
        $region115: #{vanilla_rnn_classifier.1} parent=85 // pred_check
          %p1357 = pneg %p208
        $region116: #{vanilla_rnn_classifier.1} parent=85 // pred_check_branch
          %1359 = sbr.rel (%p1357) target = $region118
        $region117: #{vanilla_rnn_classifier.1} parent=85 // pred_region
          %1360 = dma.done [#allocation6], 32
        $region118: #{vanilla_rnn_classifier.1} parent=85 // pred_fallthru
          _
      $region86: #{vanilla_rnn_classifier.1} parent=5 // pred_fallthru
        _
      %p1361 = scmp.le.s32.totalorder 2, %s17
      // Predicated region
      $region119: #{vanilla_rnn_classifier.1} parent=5 // pred_check
        %p1362 = pneg %p1361
      $region120: #{vanilla_rnn_classifier.1} parent=5 // pred_check_branch
        %1364 = sbr.rel (%p1362) target = $region122
      $region121: #{vanilla_rnn_classifier.1} parent=5 // pred_region
        %s1365 = ssub.s32 %s17, 2
      $region122: #{vanilla_rnn_classifier.1} parent=5 // pred_fallthru
        _
    $region6: #{vanilla_rnn_classifier.1} parent=1 // loop_footer
      %s21 = sadd.s32 1, %s17
    $region7: #{vanilla_rnn_classifier.1} parent=1 // loop_footer_branch
      %16 = sbr.rel target = $region3
    $region8: #{vanilla_rnn_classifier.1} parent=1 // loop_exit
      _
    %1366 = vsyncpa [#allocation5], 1
    %s1367 = scalar_lea.sflag [#allocation5], 1
    %1368 = vsyncpa %s1367, 1
    %1369 = vsyncpa [#allocation8], 1
    %1370 = vsyncpa [#allocation6], 1
    %s1371 = scalar_lea.sflag [#allocation6], 1
    %1372 = vsyncpa %s1371, 1

</llo_original>
